<compile_context>
chip_gen: v6e
topology: v6e:2x2x1
jax: 0.10.0
libtpu: 0.0.40
codegen_flags: <defaults>
</compile_context>

<pallas_src>
import functools

import jax
import jax.numpy as jnp
import numpy as np
from jax.experimental import pallas as pl
from jax.experimental.pallas import tpu as pltpu


def _stock_lstm_kernel(x_ref, slab_ref, out_ref, *, T, I, H, O):
    """Whole StockLSTM forward in one invocation.

    x_ref    : (B, T*I)     row-major flattened input, x_ref[b, t*I:(t+1)*I] == x[b, t, :]
    slab_ref : (3H+24, 4H)  packed weights/biases (see pack_slab for layout)
    out_ref  : (B, O)       fc(h1 at final timestep)
    """
    B = x_ref.shape[0]
    BP = ((B + 7) // 8) * 8          # batch padded to a full sublane group
    bf16 = jnp.bfloat16

    # ---- unpack the weight slab once (hoisted out of the time loop) ----
    RB = 8 + 3 * H                   # bias block start
    RFC = RB + 8                     # fc-weight block start
    w_ih0 = slab_ref[0:I, :].astype(bf16)                 # (I, 4H)
    w_hh0 = slab_ref[8:8 + H, :].astype(bf16)             # (H, 4H)
    w_l1 = slab_ref[8 + H:8 + 3 * H, :].astype(bf16)      # (2H, 4H) = [W_ih1^T; W_hh1^T]
    b0 = slab_ref[RB:RB + 1, :]                           # (1, 4H) f32 (b_ih0 + b_hh0)
    b1 = slab_ref[RB + 1:RB + 2, :]                       # (1, 4H) f32 (b_ih1 + b_hh1)
    b_fc = slab_ref[RB + 2:RB + 3, 0:O]                   # (1, O)  f32

    # ---- layer-0 input projection for ALL timesteps (off the critical path) ----
    x2 = x_ref[...]                                       # (B, T*I) f32
    if BP > B:
        x2 = jnp.concatenate(
            [x2, jnp.zeros((BP - B, T * I), x2.dtype)], axis=0)   # (BP, T*I)
    xg = [jnp.dot(x2[:, t * I:(t + 1) * I].astype(bf16), w_ih0,
                  preferred_element_type=jnp.float32) + b0
          for t in range(T)]                               # T x (BP, 4H) f32

    def gate_act(gates):
        # One full-width sigmoid (single EUP pass).  The g-gate columns were
        # pre-scaled by 2 at param-prep, so tanh(g) == 2*sigmoid(2g) - 1.
        sg = jax.nn.sigmoid(gates)                         # (BP, 4H)
        i = sg[:, 0 * H:1 * H]
        f = sg[:, 1 * H:2 * H]
        g = 2.0 * sg[:, 2 * H:3 * H] - 1.0
        o = sg[:, 3 * H:4 * H]
        return i, f, g, o

    h0 = jnp.zeros((BP, H), jnp.float32)
    c0 = jnp.zeros((BP, H), jnp.float32)
    h1 = jnp.zeros((BP, H), jnp.float32)
    c1 = jnp.zeros((BP, H), jnp.float32)

    # Statically unrolled recurrence (T small & known at trace time).
    for t in range(T):
        # ---- layer 0: x-part precomputed; one bf16 MXU pass for h @ W_hh0 ----
        gates0 = xg[t] + jnp.dot(h0.astype(bf16), w_hh0,
                                 preferred_element_type=jnp.float32)
        i0, f0, g0, o0 = gate_act(gates0)
        c0 = f0 * c0 + i0 * g0
        h0 = o0 * jnp.tanh(c0)

        # ---- layer 1: single fused matmul [h0, h1] @ [W_ih1^T; W_hh1^T] ----
        hh = jnp.concatenate([h0, h1], axis=-1).astype(bf16)      # (BP, 2H)
        gates1 = jnp.dot(hh, w_l1, preferred_element_type=jnp.float32) + b1
        i1, f1, g1, o1 = gate_act(gates1)
        c1 = f1 * c1 + i1 * g1
        h1 = o1 * jnp.tanh(c1)

    # ---- FC head (H -> O), in f32, written directly by the kernel ----
    cols = [jnp.sum(h1 * slab_ref[RFC + o:RFC + o + 1, 0:H],
                    axis=-1, keepdims=True) for o in range(O)]     # O x (BP, 1)
    out = cols[0] if O == 1 else jnp.concatenate(cols, axis=-1)
    out = out + b_fc
    out_ref[...] = out[:B, :].astype(out_ref.dtype)


@functools.partial(jax.jit, static_argnames=("output_size",))
def stock_lstm_forward(x, slab, output_size=1):
    """x: (batch, seq, input_size) -> (batch, output_size). One pallas_call."""
    B, T, I = x.shape
    H = slab.shape[1] // 4
    x2d = x.reshape(B, T * I)        # contiguous collapse: no copy, no extra dispatch

    kernel = functools.partial(_stock_lstm_kernel, T=T, I=I, H=H, O=output_size)
    return pl.pallas_call(
        kernel,
        out_shape=jax.ShapeDtypeStruct((B, output_size), jnp.float32),
        grid=(1,),
        in_specs=[
            pl.BlockSpec((B, T * I), lambda i: (0, 0)),    # x, flat batch-major
            pl.BlockSpec(slab.shape, lambda i: (0, 0)),    # packed weight slab
        ],
        out_specs=pl.BlockSpec((B, output_size), lambda i: (0, 0)),
        compiler_params=pltpu.CompilerParams(
            dimension_semantics=("arbitrary",)),
    )(x2d, slab)


def pack_slab(p):
    """Pack all StockLSTM weights into one (3H+24, 4H) f32 slab.

    Row layout (all segments start on 8-row boundaries, H % 8 == 0):
      [0, 8)         W_ih0^T           (rows 0..I-1 used)   } g-gate columns
      [8, 8+H)       W_hh0^T                                } (2H:3H) pre-scaled
      [8+H, 8+3H)    [W_ih1^T ; W_hh1^T]                    } by 2 (tanh-from-
      [8+3H, 16+3H)  row0: b_ih0+b_hh0   row1: b_ih1+b_hh1  }  sigmoid trick)
                     row2: b_fc in lanes 0..O-1
      [16+3H, 24+3H) W_fc rows (O rows, lanes 0..H-1), unscaled
    """
    H = p["w_hh0"].shape[1]
    I = p["w_ih0"].shape[1]
    O = p["w_fc"].shape[0]
    assert H % 8 == 0 and I <= 8 and O <= 8
    scale = jnp.ones((4 * H,), jnp.float32).at[2 * H:3 * H].set(2.0)

    slab = jnp.zeros((3 * H + 24, 4 * H), jnp.float32)
    slab = slab.at[0:I].set(p["w_ih0"].T * scale)
    slab = slab.at[8:8 + H].set(p["w_hh0"].T * scale)
    slab = slab.at[8 + H:8 + 2 * H].set(p["w_ih1"].T * scale)
    slab = slab.at[8 + 2 * H:8 + 3 * H].set(p["w_hh1"].T * scale)
    rb = 8 + 3 * H
    slab = slab.at[rb].set((p["b_ih0"] + p["b_hh0"]) * scale)
    slab = slab.at[rb + 1].set((p["b_ih1"] + p["b_hh1"]) * scale)
    slab = slab.at[rb + 2, 0:O].set(p["b_fc"])
    slab = slab.at[rb + 8:rb + 8 + O, 0:H].set(p["w_fc"])
    return slab


def init_params(key, input_size, hidden_size, output_size):
    """PyTorch-style U(-1/sqrt(H), 1/sqrt(H)) init. Returns (slab, torch_params)."""
    H, I, O = hidden_size, input_size, output_size
    bound = 1.0 / np.sqrt(H)
    ks = jax.random.split(key, 10)
    u = lambda k, shape: jax.random.uniform(k, shape, jnp.float32, -bound, bound)

    p = {
        "w_ih0": u(ks[0], (4 * H, I)), "w_hh0": u(ks[1], (4 * H, H)),
        "b_ih0": u(ks[2], (4 * H,)),   "b_hh0": u(ks[3], (4 * H,)),
        "w_ih1": u(ks[4], (4 * H, H)), "w_hh1": u(ks[5], (4 * H, H)),
        "b_ih1": u(ks[6], (4 * H,)),   "b_hh1": u(ks[7], (4 * H,)),
        "w_fc":  u(ks[8], (O, H)),     "b_fc":  u(ks[9], (O,)),
    }
    return pack_slab(p), p


def stock_lstm_reference(x, p):
    """Pure-JAX f32 reference of the PyTorch StockLSTM forward (correctness check)."""
    B, T, I = x.shape
    H = p["w_hh0"].shape[1]

    def cell(x_in, h, c, w_ih, w_hh, b_ih, b_hh):
        g = x_in @ w_ih.T + h @ w_hh.T + b_ih + b_hh
        i = jax.nn.sigmoid(g[:, :H])
        f = jax.nn.sigmoid(g[:, H:2 * H])
        gg = jnp.tanh(g[:, 2 * H:3 * H])
        o = jax.nn.sigmoid(g[:, 3 * H:])
        c_new = f * c + i * gg
        return o * jnp.tanh(c_new), c_new

    z = jnp.zeros((B, H), jnp.float32)
    h0, c0, h1, c1 = z, z, z, z
    for t in range(T):
        h0, c0 = cell(x[:, t, :], h0, c0,
                      p["w_ih0"], p["w_hh0"], p["b_ih0"], p["b_hh0"])
        h1, c1 = cell(h0, h1, c1,
                      p["w_ih1"], p["w_hh1"], p["b_ih1"], p["b_hh1"])
    return h1 @ p["w_fc"].T + p["b_fc"]


if __name__ == "__main__":
    # Shapes consistent with StockLSTM(input_size=4, hidden_size=32,
    # num_layers=2, output_size=1): x is (batch=2, seq=8, features=4).
    B, T, I, H, O = 2, 8, 4, 32, 1

    key = jax.random.PRNGKey(0)
    k_x, k_p = jax.random.split(key)
    x = jax.random.normal(k_x, (B, T, I), dtype=jnp.float32)
    slab, torch_params = init_params(k_p, I, H, O)

    out = stock_lstm_forward(x, slab, output_size=O)
    out = jax.block_until_ready(out)
    assert out.shape == (B, O)

    ref = jax.block_until_ready(stock_lstm_reference(x, torch_params))
    # bf16 MXU operands (f32 accumulation) + tanh-from-sigmoid + fused layer-1
    # summation order => looser tolerance than a pure-f32 comparison.
    np.testing.assert_allclose(np.asarray(out), np.asarray(ref),
                               rtol=3e-2, atol=3e-2)
    print("KERNEL_OK")
</pallas_src>

<mosaic_0001>
module attributes {stable_mosaic.version = 11 : i64} {
  func.func @_stock_lstm_kernel(%arg0: i32, %arg1: memref<2x32xf32, #tpu.memory_space<vmem>>, %arg2: memref<120x128xf32, #tpu.memory_space<vmem>>, %arg3: memref<2x1xf32, #tpu.memory_space<vmem>>) attributes {dimension_semantics = [#tpu.dimension_semantics<arbitrary>], iteration_bounds = array<i64: 1>, scalar_prefetch = 0 : i64, scratch_operands = 0 : i64, tpu.core_type = #tpu.core_type<tc>, window_params = [{pipeline_mode = #tpu.pipeline_mode<synchronous>, transform_indices = @transform_0, window_bounds = array<i64: 2, 32>}, {pipeline_mode = #tpu.pipeline_mode<synchronous>, transform_indices = @transform_1, window_bounds = array<i64: 120, 128>}, {pipeline_mode = #tpu.pipeline_mode<synchronous>, transform_indices = @transform_2, window_bounds = array<i64: 2, 1>}]} {
    %c0 = arith.constant 0 : index
    %c0_0 = arith.constant 0 : index
    %0 = vector.load %arg2[%c0, %c0_0] : memref<120x128xf32, #tpu.memory_space<vmem>>, vector<4x128xf32>
    %1 = arith.truncf %0 : vector<4x128xf32> to vector<4x128xbf16>
    %c8 = arith.constant 8 : index
    %c0_1 = arith.constant 0 : index
    %2 = vector.load %arg2[%c8, %c0_1] : memref<120x128xf32, #tpu.memory_space<vmem>>, vector<32x128xf32>
    %3 = arith.truncf %2 : vector<32x128xf32> to vector<32x128xbf16>
    %c40 = arith.constant 40 : index
    %c0_2 = arith.constant 0 : index
    %4 = vector.load %arg2[%c40, %c0_2] : memref<120x128xf32, #tpu.memory_space<vmem>>, vector<64x128xf32>
    %5 = arith.truncf %4 : vector<64x128xf32> to vector<64x128xbf16>
    %c104 = arith.constant 104 : index
    %c0_3 = arith.constant 0 : index
    %6 = vector.load %arg2[%c104, %c0_3] : memref<120x128xf32, #tpu.memory_space<vmem>>, vector<1x128xf32>
    %c105 = arith.constant 105 : index
    %c0_4 = arith.constant 0 : index
    %7 = vector.load %arg2[%c105, %c0_4] : memref<120x128xf32, #tpu.memory_space<vmem>>, vector<1x128xf32>
    %c106 = arith.constant 106 : index
    %c0_5 = arith.constant 0 : index
    %8 = vector.load %arg2[%c106, %c0_5] : memref<120x128xf32, #tpu.memory_space<vmem>>, vector<1x1xf32>
    %c0_6 = arith.constant 0 : index
    %c0_7 = arith.constant 0 : index
    %9 = vector.load %arg1[%c0_6, %c0_7] : memref<2x32xf32, #tpu.memory_space<vmem>>, vector<2x32xf32>
    %cst = arith.constant 0.000000e+00 : f32
    %10 = vector.broadcast %cst : f32 to vector<6x32xf32>
    %11 = tpu.concatenate %9, %10 in 0 : vector<2x32xf32>, vector<6x32xf32> -> vector<8x32xf32>
    %12 = vector.extract_strided_slice %11 {offsets = [0, 0], sizes = [8, 4], strides = [1, 1]} : vector<8x32xf32> to vector<8x4xf32>
    %13 = arith.truncf %12 : vector<8x4xf32> to vector<8x4xbf16>
    %cst_8 = arith.constant dense<0.000000e+00> : vector<8x128xf32>
    %14 = tpu.matmul %13, %1, %cst_8 {dimension_numbers = #tpu.dot_dimension_numbers<[1], [0], [0], [1], [0, 0, 1, 1], [], []>} : vector<8x4xbf16>, vector<4x128xbf16>, vector<8x128xf32> -> vector<8x128xf32>
    %15 = vector.broadcast %6 : vector<1x128xf32> to vector<8x128xf32>
    %16 = arith.addf %14, %15 : vector<8x128xf32>
    %17 = vector.extract_strided_slice %11 {offsets = [0, 4], sizes = [8, 4], strides = [1, 1]} : vector<8x32xf32> to vector<8x4xf32>
    %18 = arith.truncf %17 : vector<8x4xf32> to vector<8x4xbf16>
    %cst_9 = arith.constant dense<0.000000e+00> : vector<8x128xf32>
    %19 = tpu.matmul %18, %1, %cst_9 {dimension_numbers = #tpu.dot_dimension_numbers<[1], [0], [0], [1], [0, 0, 1, 1], [], []>} : vector<8x4xbf16>, vector<4x128xbf16>, vector<8x128xf32> -> vector<8x128xf32>
    %20 = vector.broadcast %6 : vector<1x128xf32> to vector<8x128xf32>
    %21 = arith.addf %19, %20 : vector<8x128xf32>
    %22 = vector.extract_strided_slice %11 {offsets = [0, 8], sizes = [8, 4], strides = [1, 1]} : vector<8x32xf32> to vector<8x4xf32>
    %23 = arith.truncf %22 : vector<8x4xf32> to vector<8x4xbf16>
    %cst_10 = arith.constant dense<0.000000e+00> : vector<8x128xf32>
    %24 = tpu.matmul %23, %1, %cst_10 {dimension_numbers = #tpu.dot_dimension_numbers<[1], [0], [0], [1], [0, 0, 1, 1], [], []>} : vector<8x4xbf16>, vector<4x128xbf16>, vector<8x128xf32> -> vector<8x128xf32>
    %25 = vector.broadcast %6 : vector<1x128xf32> to vector<8x128xf32>
    %26 = arith.addf %24, %25 : vector<8x128xf32>
    %27 = vector.extract_strided_slice %11 {offsets = [0, 12], sizes = [8, 4], strides = [1, 1]} : vector<8x32xf32> to vector<8x4xf32>
    %28 = arith.truncf %27 : vector<8x4xf32> to vector<8x4xbf16>
    %cst_11 = arith.constant dense<0.000000e+00> : vector<8x128xf32>
    %29 = tpu.matmul %28, %1, %cst_11 {dimension_numbers = #tpu.dot_dimension_numbers<[1], [0], [0], [1], [0, 0, 1, 1], [], []>} : vector<8x4xbf16>, vector<4x128xbf16>, vector<8x128xf32> -> vector<8x128xf32>
    %30 = vector.broadcast %6 : vector<1x128xf32> to vector<8x128xf32>
    %31 = arith.addf %29, %30 : vector<8x128xf32>
    %32 = vector.extract_strided_slice %11 {offsets = [0, 16], sizes = [8, 4], strides = [1, 1]} : vector<8x32xf32> to vector<8x4xf32>
    %33 = arith.truncf %32 : vector<8x4xf32> to vector<8x4xbf16>
    %cst_12 = arith.constant dense<0.000000e+00> : vector<8x128xf32>
    %34 = tpu.matmul %33, %1, %cst_12 {dimension_numbers = #tpu.dot_dimension_numbers<[1], [0], [0], [1], [0, 0, 1, 1], [], []>} : vector<8x4xbf16>, vector<4x128xbf16>, vector<8x128xf32> -> vector<8x128xf32>
    %35 = vector.broadcast %6 : vector<1x128xf32> to vector<8x128xf32>
    %36 = arith.addf %34, %35 : vector<8x128xf32>
    %37 = vector.extract_strided_slice %11 {offsets = [0, 20], sizes = [8, 4], strides = [1, 1]} : vector<8x32xf32> to vector<8x4xf32>
    %38 = arith.truncf %37 : vector<8x4xf32> to vector<8x4xbf16>
    %cst_13 = arith.constant dense<0.000000e+00> : vector<8x128xf32>
    %39 = tpu.matmul %38, %1, %cst_13 {dimension_numbers = #tpu.dot_dimension_numbers<[1], [0], [0], [1], [0, 0, 1, 1], [], []>} : vector<8x4xbf16>, vector<4x128xbf16>, vector<8x128xf32> -> vector<8x128xf32>
    %40 = vector.broadcast %6 : vector<1x128xf32> to vector<8x128xf32>
    %41 = arith.addf %39, %40 : vector<8x128xf32>
    %42 = vector.extract_strided_slice %11 {offsets = [0, 24], sizes = [8, 4], strides = [1, 1]} : vector<8x32xf32> to vector<8x4xf32>
    %43 = arith.truncf %42 : vector<8x4xf32> to vector<8x4xbf16>
    %cst_14 = arith.constant dense<0.000000e+00> : vector<8x128xf32>
    %44 = tpu.matmul %43, %1, %cst_14 {dimension_numbers = #tpu.dot_dimension_numbers<[1], [0], [0], [1], [0, 0, 1, 1], [], []>} : vector<8x4xbf16>, vector<4x128xbf16>, vector<8x128xf32> -> vector<8x128xf32>
    %45 = vector.broadcast %6 : vector<1x128xf32> to vector<8x128xf32>
    %46 = arith.addf %44, %45 : vector<8x128xf32>
    %47 = vector.extract_strided_slice %11 {offsets = [0, 28], sizes = [8, 4], strides = [1, 1]} : vector<8x32xf32> to vector<8x4xf32>
    %48 = arith.truncf %47 : vector<8x4xf32> to vector<8x4xbf16>
    %cst_15 = arith.constant dense<0.000000e+00> : vector<8x128xf32>
    %49 = tpu.matmul %48, %1, %cst_15 {dimension_numbers = #tpu.dot_dimension_numbers<[1], [0], [0], [1], [0, 0, 1, 1], [], []>} : vector<8x4xbf16>, vector<4x128xbf16>, vector<8x128xf32> -> vector<8x128xf32>
    %50 = vector.broadcast %6 : vector<1x128xf32> to vector<8x128xf32>
    %51 = arith.addf %49, %50 : vector<8x128xf32>
    %cst_16 = arith.constant 0.000000e+00 : f32
    %52 = vector.broadcast %cst_16 : f32 to vector<8x32xf32>
    %cst_17 = arith.constant 0.000000e+00 : f32
    %53 = vector.broadcast %cst_17 : f32 to vector<8x32xf32>
    %cst_18 = arith.constant 0.000000e+00 : f32
    %54 = vector.broadcast %cst_18 : f32 to vector<8x32xf32>
    %cst_19 = arith.constant 0.000000e+00 : f32
    %55 = vector.broadcast %cst_19 : f32 to vector<8x32xf32>
    %56 = arith.truncf %52 : vector<8x32xf32> to vector<8x32xbf16>
    %cst_20 = arith.constant dense<0.000000e+00> : vector<8x128xf32>
    %57 = tpu.matmul %56, %3, %cst_20 {dimension_numbers = #tpu.dot_dimension_numbers<[1], [0], [0], [1], [0, 0, 1, 1], [], []>} : vector<8x32xbf16>, vector<32x128xbf16>, vector<8x128xf32> -> vector<8x128xf32>
    %58 = arith.addf %16, %57 : vector<8x128xf32>
    %59 = arith.negf %58 : vector<8x128xf32>
    %60 = math.exp %59 : vector<8x128xf32>
    %cst_21 = arith.constant 1.000000e+00 : f32
    %61 = vector.broadcast %cst_21 : f32 to vector<8x128xf32>
    %62 = arith.addf %61, %60 : vector<8x128xf32>
    %63 = arith.divf %61, %62 : vector<8x128xf32>
    %64 = vector.extract_strided_slice %63 {offsets = [0, 0], sizes = [8, 32], strides = [1, 1]} : vector<8x128xf32> to vector<8x32xf32>
    %65 = vector.extract_strided_slice %63 {offsets = [0, 32], sizes = [8, 32], strides = [1, 1]} : vector<8x128xf32> to vector<8x32xf32>
    %66 = vector.extract_strided_slice %63 {offsets = [0, 64], sizes = [8, 32], strides = [1, 1]} : vector<8x128xf32> to vector<8x32xf32>
    %cst_22 = arith.constant 2.000000e+00 : f32
    %67 = vector.broadcast %cst_22 : f32 to vector<8x32xf32>
    %68 = arith.mulf %67, %66 : vector<8x32xf32>
    %cst_23 = arith.constant 1.000000e+00 : f32
    %69 = vector.broadcast %cst_23 : f32 to vector<8x32xf32>
    %70 = arith.subf %68, %69 : vector<8x32xf32>
    %71 = vector.extract_strided_slice %63 {offsets = [0, 96], sizes = [8, 32], strides = [1, 1]} : vector<8x128xf32> to vector<8x32xf32>
    %72 = arith.mulf %65, %53 : vector<8x32xf32>
    %73 = arith.mulf %64, %70 : vector<8x32xf32>
    %74 = arith.addf %72, %73 : vector<8x32xf32>
    %75 = math.tanh %74 : vector<8x32xf32>
    %76 = arith.mulf %71, %75 : vector<8x32xf32>
    %77 = tpu.concatenate %76, %54 in 1 : vector<8x32xf32>, vector<8x32xf32> -> vector<8x64xf32>
    %78 = arith.truncf %77 : vector<8x64xf32> to vector<8x64xbf16>
    %cst_24 = arith.constant dense<0.000000e+00> : vector<8x128xf32>
    %79 = tpu.matmul %78, %5, %cst_24 {dimension_numbers = #tpu.dot_dimension_numbers<[1], [0], [0], [1], [0, 0, 1, 1], [], []>} : vector<8x64xbf16>, vector<64x128xbf16>, vector<8x128xf32> -> vector<8x128xf32>
    %80 = vector.broadcast %7 : vector<1x128xf32> to vector<8x128xf32>
    %81 = arith.addf %79, %80 : vector<8x128xf32>
    %82 = arith.negf %81 : vector<8x128xf32>
    %83 = math.exp %82 : vector<8x128xf32>
    %cst_25 = arith.constant 1.000000e+00 : f32
    %84 = vector.broadcast %cst_25 : f32 to vector<8x128xf32>
    %85 = arith.addf %84, %83 : vector<8x128xf32>
    %86 = arith.divf %84, %85 : vector<8x128xf32>
    %87 = vector.extract_strided_slice %86 {offsets = [0, 0], sizes = [8, 32], strides = [1, 1]} : vector<8x128xf32> to vector<8x32xf32>
    %88 = vector.extract_strided_slice %86 {offsets = [0, 32], sizes = [8, 32], strides = [1, 1]} : vector<8x128xf32> to vector<8x32xf32>
    %89 = vector.extract_strided_slice %86 {offsets = [0, 64], sizes = [8, 32], strides = [1, 1]} : vector<8x128xf32> to vector<8x32xf32>
    %cst_26 = arith.constant 2.000000e+00 : f32
    %90 = vector.broadcast %cst_26 : f32 to vector<8x32xf32>
    %91 = arith.mulf %90, %89 : vector<8x32xf32>
    %cst_27 = arith.constant 1.000000e+00 : f32
    %92 = vector.broadcast %cst_27 : f32 to vector<8x32xf32>
    %93 = arith.subf %91, %92 : vector<8x32xf32>
    %94 = vector.extract_strided_slice %86 {offsets = [0, 96], sizes = [8, 32], strides = [1, 1]} : vector<8x128xf32> to vector<8x32xf32>
    %95 = arith.mulf %88, %55 : vector<8x32xf32>
    %96 = arith.mulf %87, %93 : vector<8x32xf32>
    %97 = arith.addf %95, %96 : vector<8x32xf32>
    %98 = math.tanh %97 : vector<8x32xf32>
    %99 = arith.mulf %94, %98 : vector<8x32xf32>
    %100 = arith.truncf %76 : vector<8x32xf32> to vector<8x32xbf16>
    %cst_28 = arith.constant dense<0.000000e+00> : vector<8x128xf32>
    %101 = tpu.matmul %100, %3, %cst_28 {dimension_numbers = #tpu.dot_dimension_numbers<[1], [0], [0], [1], [0, 0, 1, 1], [], []>} : vector<8x32xbf16>, vector<32x128xbf16>, vector<8x128xf32> -> vector<8x128xf32>
    %102 = arith.addf %21, %101 : vector<8x128xf32>
    %103 = arith.negf %102 : vector<8x128xf32>
    %104 = math.exp %103 : vector<8x128xf32>
    %cst_29 = arith.constant 1.000000e+00 : f32
    %105 = vector.broadcast %cst_29 : f32 to vector<8x128xf32>
    %106 = arith.addf %105, %104 : vector<8x128xf32>
    %107 = arith.divf %105, %106 : vector<8x128xf32>
    %108 = vector.extract_strided_slice %107 {offsets = [0, 0], sizes = [8, 32], strides = [1, 1]} : vector<8x128xf32> to vector<8x32xf32>
    %109 = vector.extract_strided_slice %107 {offsets = [0, 32], sizes = [8, 32], strides = [1, 1]} : vector<8x128xf32> to vector<8x32xf32>
    %110 = vector.extract_strided_slice %107 {offsets = [0, 64], sizes = [8, 32], strides = [1, 1]} : vector<8x128xf32> to vector<8x32xf32>
    %cst_30 = arith.constant 2.000000e+00 : f32
    %111 = vector.broadcast %cst_30 : f32 to vector<8x32xf32>
    %112 = arith.mulf %111, %110 : vector<8x32xf32>
    %cst_31 = arith.constant 1.000000e+00 : f32
    %113 = vector.broadcast %cst_31 : f32 to vector<8x32xf32>
    %114 = arith.subf %112, %113 : vector<8x32xf32>
    %115 = vector.extract_strided_slice %107 {offsets = [0, 96], sizes = [8, 32], strides = [1, 1]} : vector<8x128xf32> to vector<8x32xf32>
    %116 = arith.mulf %109, %74 : vector<8x32xf32>
    %117 = arith.mulf %108, %114 : vector<8x32xf32>
    %118 = arith.addf %116, %117 : vector<8x32xf32>
    %119 = math.tanh %118 : vector<8x32xf32>
    %120 = arith.mulf %115, %119 : vector<8x32xf32>
    %121 = tpu.concatenate %120, %99 in 1 : vector<8x32xf32>, vector<8x32xf32> -> vector<8x64xf32>
    %122 = arith.truncf %121 : vector<8x64xf32> to vector<8x64xbf16>
    %cst_32 = arith.constant dense<0.000000e+00> : vector<8x128xf32>
    %123 = tpu.matmul %122, %5, %cst_32 {dimension_numbers = #tpu.dot_dimension_numbers<[1], [0], [0], [1], [0, 0, 1, 1], [], []>} : vector<8x64xbf16>, vector<64x128xbf16>, vector<8x128xf32> -> vector<8x128xf32>
    %124 = vector.broadcast %7 : vector<1x128xf32> to vector<8x128xf32>
    %125 = arith.addf %123, %124 : vector<8x128xf32>
    %126 = arith.negf %125 : vector<8x128xf32>
    %127 = math.exp %126 : vector<8x128xf32>
    %cst_33 = arith.constant 1.000000e+00 : f32
    %128 = vector.broadcast %cst_33 : f32 to vector<8x128xf32>
    %129 = arith.addf %128, %127 : vector<8x128xf32>
    %130 = arith.divf %128, %129 : vector<8x128xf32>
    %131 = vector.extract_strided_slice %130 {offsets = [0, 0], sizes = [8, 32], strides = [1, 1]} : vector<8x128xf32> to vector<8x32xf32>
    %132 = vector.extract_strided_slice %130 {offsets = [0, 32], sizes = [8, 32], strides = [1, 1]} : vector<8x128xf32> to vector<8x32xf32>
    %133 = vector.extract_strided_slice %130 {offsets = [0, 64], sizes = [8, 32], strides = [1, 1]} : vector<8x128xf32> to vector<8x32xf32>
    %cst_34 = arith.constant 2.000000e+00 : f32
    %134 = vector.broadcast %cst_34 : f32 to vector<8x32xf32>
    %135 = arith.mulf %134, %133 : vector<8x32xf32>
    %cst_35 = arith.constant 1.000000e+00 : f32
    %136 = vector.broadcast %cst_35 : f32 to vector<8x32xf32>
    %137 = arith.subf %135, %136 : vector<8x32xf32>
    %138 = vector.extract_strided_slice %130 {offsets = [0, 96], sizes = [8, 32], strides = [1, 1]} : vector<8x128xf32> to vector<8x32xf32>
    %139 = arith.mulf %132, %97 : vector<8x32xf32>
    %140 = arith.mulf %131, %137 : vector<8x32xf32>
    %141 = arith.addf %139, %140 : vector<8x32xf32>
    %142 = math.tanh %141 : vector<8x32xf32>
    %143 = arith.mulf %138, %142 : vector<8x32xf32>
    %144 = arith.truncf %120 : vector<8x32xf32> to vector<8x32xbf16>
    %cst_36 = arith.constant dense<0.000000e+00> : vector<8x128xf32>
    %145 = tpu.matmul %144, %3, %cst_36 {dimension_numbers = #tpu.dot_dimension_numbers<[1], [0], [0], [1], [0, 0, 1, 1], [], []>} : vector<8x32xbf16>, vector<32x128xbf16>, vector<8x128xf32> -> vector<8x128xf32>
    %146 = arith.addf %26, %145 : vector<8x128xf32>
    %147 = arith.negf %146 : vector<8x128xf32>
    %148 = math.exp %147 : vector<8x128xf32>
    %cst_37 = arith.constant 1.000000e+00 : f32
    %149 = vector.broadcast %cst_37 : f32 to vector<8x128xf32>
    %150 = arith.addf %149, %148 : vector<8x128xf32>
    %151 = arith.divf %149, %150 : vector<8x128xf32>
    %152 = vector.extract_strided_slice %151 {offsets = [0, 0], sizes = [8, 32], strides = [1, 1]} : vector<8x128xf32> to vector<8x32xf32>
    %153 = vector.extract_strided_slice %151 {offsets = [0, 32], sizes = [8, 32], strides = [1, 1]} : vector<8x128xf32> to vector<8x32xf32>
    %154 = vector.extract_strided_slice %151 {offsets = [0, 64], sizes = [8, 32], strides = [1, 1]} : vector<8x128xf32> to vector<8x32xf32>
    %cst_38 = arith.constant 2.000000e+00 : f32
    %155 = vector.broadcast %cst_38 : f32 to vector<8x32xf32>
    %156 = arith.mulf %155, %154 : vector<8x32xf32>
    %cst_39 = arith.constant 1.000000e+00 : f32
    %157 = vector.broadcast %cst_39 : f32 to vector<8x32xf32>
    %158 = arith.subf %156, %157 : vector<8x32xf32>
    %159 = vector.extract_strided_slice %151 {offsets = [0, 96], sizes = [8, 32], strides = [1, 1]} : vector<8x128xf32> to vector<8x32xf32>
    %160 = arith.mulf %153, %118 : vector<8x32xf32>
    %161 = arith.mulf %152, %158 : vector<8x32xf32>
    %162 = arith.addf %160, %161 : vector<8x32xf32>
    %163 = math.tanh %162 : vector<8x32xf32>
    %164 = arith.mulf %159, %163 : vector<8x32xf32>
    %165 = tpu.concatenate %164, %143 in 1 : vector<8x32xf32>, vector<8x32xf32> -> vector<8x64xf32>
    %166 = arith.truncf %165 : vector<8x64xf32> to vector<8x64xbf16>
    %cst_40 = arith.constant dense<0.000000e+00> : vector<8x128xf32>
    %167 = tpu.matmul %166, %5, %cst_40 {dimension_numbers = #tpu.dot_dimension_numbers<[1], [0], [0], [1], [0, 0, 1, 1], [], []>} : vector<8x64xbf16>, vector<64x128xbf16>, vector<8x128xf32> -> vector<8x128xf32>
    %168 = vector.broadcast %7 : vector<1x128xf32> to vector<8x128xf32>
    %169 = arith.addf %167, %168 : vector<8x128xf32>
    %170 = arith.negf %169 : vector<8x128xf32>
    %171 = math.exp %170 : vector<8x128xf32>
    %cst_41 = arith.constant 1.000000e+00 : f32
    %172 = vector.broadcast %cst_41 : f32 to vector<8x128xf32>
    %173 = arith.addf %172, %171 : vector<8x128xf32>
    %174 = arith.divf %172, %173 : vector<8x128xf32>
    %175 = vector.extract_strided_slice %174 {offsets = [0, 0], sizes = [8, 32], strides = [1, 1]} : vector<8x128xf32> to vector<8x32xf32>
    %176 = vector.extract_strided_slice %174 {offsets = [0, 32], sizes = [8, 32], strides = [1, 1]} : vector<8x128xf32> to vector<8x32xf32>
    %177 = vector.extract_strided_slice %174 {offsets = [0, 64], sizes = [8, 32], strides = [1, 1]} : vector<8x128xf32> to vector<8x32xf32>
    %cst_42 = arith.constant 2.000000e+00 : f32
    %178 = vector.broadcast %cst_42 : f32 to vector<8x32xf32>
    %179 = arith.mulf %178, %177 : vector<8x32xf32>
    %cst_43 = arith.constant 1.000000e+00 : f32
    %180 = vector.broadcast %cst_43 : f32 to vector<8x32xf32>
    %181 = arith.subf %179, %180 : vector<8x32xf32>
    %182 = vector.extract_strided_slice %174 {offsets = [0, 96], sizes = [8, 32], strides = [1, 1]} : vector<8x128xf32> to vector<8x32xf32>
    %183 = arith.mulf %176, %141 : vector<8x32xf32>
    %184 = arith.mulf %175, %181 : vector<8x32xf32>
    %185 = arith.addf %183, %184 : vector<8x32xf32>
    %186 = math.tanh %185 : vector<8x32xf32>
    %187 = arith.mulf %182, %186 : vector<8x32xf32>
    %188 = arith.truncf %164 : vector<8x32xf32> to vector<8x32xbf16>
    %cst_44 = arith.constant dense<0.000000e+00> : vector<8x128xf32>
    %189 = tpu.matmul %188, %3, %cst_44 {dimension_numbers = #tpu.dot_dimension_numbers<[1], [0], [0], [1], [0, 0, 1, 1], [], []>} : vector<8x32xbf16>, vector<32x128xbf16>, vector<8x128xf32> -> vector<8x128xf32>
    %190 = arith.addf %31, %189 : vector<8x128xf32>
    %191 = arith.negf %190 : vector<8x128xf32>
    %192 = math.exp %191 : vector<8x128xf32>
    %cst_45 = arith.constant 1.000000e+00 : f32
    %193 = vector.broadcast %cst_45 : f32 to vector<8x128xf32>
    %194 = arith.addf %193, %192 : vector<8x128xf32>
    %195 = arith.divf %193, %194 : vector<8x128xf32>
    %196 = vector.extract_strided_slice %195 {offsets = [0, 0], sizes = [8, 32], strides = [1, 1]} : vector<8x128xf32> to vector<8x32xf32>
    %197 = vector.extract_strided_slice %195 {offsets = [0, 32], sizes = [8, 32], strides = [1, 1]} : vector<8x128xf32> to vector<8x32xf32>
    %198 = vector.extract_strided_slice %195 {offsets = [0, 64], sizes = [8, 32], strides = [1, 1]} : vector<8x128xf32> to vector<8x32xf32>
    %cst_46 = arith.constant 2.000000e+00 : f32
    %199 = vector.broadcast %cst_46 : f32 to vector<8x32xf32>
    %200 = arith.mulf %199, %198 : vector<8x32xf32>
    %cst_47 = arith.constant 1.000000e+00 : f32
    %201 = vector.broadcast %cst_47 : f32 to vector<8x32xf32>
    %202 = arith.subf %200, %201 : vector<8x32xf32>
    %203 = vector.extract_strided_slice %195 {offsets = [0, 96], sizes = [8, 32], strides = [1, 1]} : vector<8x128xf32> to vector<8x32xf32>
    %204 = arith.mulf %197, %162 : vector<8x32xf32>
    %205 = arith.mulf %196, %202 : vector<8x32xf32>
    %206 = arith.addf %204, %205 : vector<8x32xf32>
    %207 = math.tanh %206 : vector<8x32xf32>
    %208 = arith.mulf %203, %207 : vector<8x32xf32>
    %209 = tpu.concatenate %208, %187 in 1 : vector<8x32xf32>, vector<8x32xf32> -> vector<8x64xf32>
    %210 = arith.truncf %209 : vector<8x64xf32> to vector<8x64xbf16>
    %cst_48 = arith.constant dense<0.000000e+00> : vector<8x128xf32>
    %211 = tpu.matmul %210, %5, %cst_48 {dimension_numbers = #tpu.dot_dimension_numbers<[1], [0], [0], [1], [0, 0, 1, 1], [], []>} : vector<8x64xbf16>, vector<64x128xbf16>, vector<8x128xf32> -> vector<8x128xf32>
    %212 = vector.broadcast %7 : vector<1x128xf32> to vector<8x128xf32>
    %213 = arith.addf %211, %212 : vector<8x128xf32>
    %214 = arith.negf %213 : vector<8x128xf32>
    %215 = math.exp %214 : vector<8x128xf32>
    %cst_49 = arith.constant 1.000000e+00 : f32
    %216 = vector.broadcast %cst_49 : f32 to vector<8x128xf32>
    %217 = arith.addf %216, %215 : vector<8x128xf32>
    %218 = arith.divf %216, %217 : vector<8x128xf32>
    %219 = vector.extract_strided_slice %218 {offsets = [0, 0], sizes = [8, 32], strides = [1, 1]} : vector<8x128xf32> to vector<8x32xf32>
    %220 = vector.extract_strided_slice %218 {offsets = [0, 32], sizes = [8, 32], strides = [1, 1]} : vector<8x128xf32> to vector<8x32xf32>
    %221 = vector.extract_strided_slice %218 {offsets = [0, 64], sizes = [8, 32], strides = [1, 1]} : vector<8x128xf32> to vector<8x32xf32>
    %cst_50 = arith.constant 2.000000e+00 : f32
    %222 = vector.broadcast %cst_50 : f32 to vector<8x32xf32>
    %223 = arith.mulf %222, %221 : vector<8x32xf32>
    %cst_51 = arith.constant 1.000000e+00 : f32
    %224 = vector.broadcast %cst_51 : f32 to vector<8x32xf32>
    %225 = arith.subf %223, %224 : vector<8x32xf32>
    %226 = vector.extract_strided_slice %218 {offsets = [0, 96], sizes = [8, 32], strides = [1, 1]} : vector<8x128xf32> to vector<8x32xf32>
    %227 = arith.mulf %220, %185 : vector<8x32xf32>
    %228 = arith.mulf %219, %225 : vector<8x32xf32>
    %229 = arith.addf %227, %228 : vector<8x32xf32>
    %230 = math.tanh %229 : vector<8x32xf32>
    %231 = arith.mulf %226, %230 : vector<8x32xf32>
    %232 = arith.truncf %208 : vector<8x32xf32> to vector<8x32xbf16>
    %cst_52 = arith.constant dense<0.000000e+00> : vector<8x128xf32>
    %233 = tpu.matmul %232, %3, %cst_52 {dimension_numbers = #tpu.dot_dimension_numbers<[1], [0], [0], [1], [0, 0, 1, 1], [], []>} : vector<8x32xbf16>, vector<32x128xbf16>, vector<8x128xf32> -> vector<8x128xf32>
    %234 = arith.addf %36, %233 : vector<8x128xf32>
    %235 = arith.negf %234 : vector<8x128xf32>
    %236 = math.exp %235 : vector<8x128xf32>
    %cst_53 = arith.constant 1.000000e+00 : f32
    %237 = vector.broadcast %cst_53 : f32 to vector<8x128xf32>
    %238 = arith.addf %237, %236 : vector<8x128xf32>
    %239 = arith.divf %237, %238 : vector<8x128xf32>
    %240 = vector.extract_strided_slice %239 {offsets = [0, 0], sizes = [8, 32], strides = [1, 1]} : vector<8x128xf32> to vector<8x32xf32>
    %241 = vector.extract_strided_slice %239 {offsets = [0, 32], sizes = [8, 32], strides = [1, 1]} : vector<8x128xf32> to vector<8x32xf32>
    %242 = vector.extract_strided_slice %239 {offsets = [0, 64], sizes = [8, 32], strides = [1, 1]} : vector<8x128xf32> to vector<8x32xf32>
    %cst_54 = arith.constant 2.000000e+00 : f32
    %243 = vector.broadcast %cst_54 : f32 to vector<8x32xf32>
    %244 = arith.mulf %243, %242 : vector<8x32xf32>
    %cst_55 = arith.constant 1.000000e+00 : f32
    %245 = vector.broadcast %cst_55 : f32 to vector<8x32xf32>
    %246 = arith.subf %244, %245 : vector<8x32xf32>
    %247 = vector.extract_strided_slice %239 {offsets = [0, 96], sizes = [8, 32], strides = [1, 1]} : vector<8x128xf32> to vector<8x32xf32>
    %248 = arith.mulf %241, %206 : vector<8x32xf32>
    %249 = arith.mulf %240, %246 : vector<8x32xf32>
    %250 = arith.addf %248, %249 : vector<8x32xf32>
    %251 = math.tanh %250 : vector<8x32xf32>
    %252 = arith.mulf %247, %251 : vector<8x32xf32>
    %253 = tpu.concatenate %252, %231 in 1 : vector<8x32xf32>, vector<8x32xf32> -> vector<8x64xf32>
    %254 = arith.truncf %253 : vector<8x64xf32> to vector<8x64xbf16>
    %cst_56 = arith.constant dense<0.000000e+00> : vector<8x128xf32>
    %255 = tpu.matmul %254, %5, %cst_56 {dimension_numbers = #tpu.dot_dimension_numbers<[1], [0], [0], [1], [0, 0, 1, 1], [], []>} : vector<8x64xbf16>, vector<64x128xbf16>, vector<8x128xf32> -> vector<8x128xf32>
    %256 = vector.broadcast %7 : vector<1x128xf32> to vector<8x128xf32>
    %257 = arith.addf %255, %256 : vector<8x128xf32>
    %258 = arith.negf %257 : vector<8x128xf32>
    %259 = math.exp %258 : vector<8x128xf32>
    %cst_57 = arith.constant 1.000000e+00 : f32
    %260 = vector.broadcast %cst_57 : f32 to vector<8x128xf32>
    %261 = arith.addf %260, %259 : vector<8x128xf32>
    %262 = arith.divf %260, %261 : vector<8x128xf32>
    %263 = vector.extract_strided_slice %262 {offsets = [0, 0], sizes = [8, 32], strides = [1, 1]} : vector<8x128xf32> to vector<8x32xf32>
    %264 = vector.extract_strided_slice %262 {offsets = [0, 32], sizes = [8, 32], strides = [1, 1]} : vector<8x128xf32> to vector<8x32xf32>
    %265 = vector.extract_strided_slice %262 {offsets = [0, 64], sizes = [8, 32], strides = [1, 1]} : vector<8x128xf32> to vector<8x32xf32>
    %cst_58 = arith.constant 2.000000e+00 : f32
    %266 = vector.broadcast %cst_58 : f32 to vector<8x32xf32>
    %267 = arith.mulf %266, %265 : vector<8x32xf32>
    %cst_59 = arith.constant 1.000000e+00 : f32
    %268 = vector.broadcast %cst_59 : f32 to vector<8x32xf32>
    %269 = arith.subf %267, %268 : vector<8x32xf32>
    %270 = vector.extract_strided_slice %262 {offsets = [0, 96], sizes = [8, 32], strides = [1, 1]} : vector<8x128xf32> to vector<8x32xf32>
    %271 = arith.mulf %264, %229 : vector<8x32xf32>
    %272 = arith.mulf %263, %269 : vector<8x32xf32>
    %273 = arith.addf %271, %272 : vector<8x32xf32>
    %274 = math.tanh %273 : vector<8x32xf32>
    %275 = arith.mulf %270, %274 : vector<8x32xf32>
    %276 = arith.truncf %252 : vector<8x32xf32> to vector<8x32xbf16>
    %cst_60 = arith.constant dense<0.000000e+00> : vector<8x128xf32>
    %277 = tpu.matmul %276, %3, %cst_60 {dimension_numbers = #tpu.dot_dimension_numbers<[1], [0], [0], [1], [0, 0, 1, 1], [], []>} : vector<8x32xbf16>, vector<32x128xbf16>, vector<8x128xf32> -> vector<8x128xf32>
    %278 = arith.addf %41, %277 : vector<8x128xf32>
    %279 = arith.negf %278 : vector<8x128xf32>
    %280 = math.exp %279 : vector<8x128xf32>
    %cst_61 = arith.constant 1.000000e+00 : f32
    %281 = vector.broadcast %cst_61 : f32 to vector<8x128xf32>
    %282 = arith.addf %281, %280 : vector<8x128xf32>
    %283 = arith.divf %281, %282 : vector<8x128xf32>
    %284 = vector.extract_strided_slice %283 {offsets = [0, 0], sizes = [8, 32], strides = [1, 1]} : vector<8x128xf32> to vector<8x32xf32>
    %285 = vector.extract_strided_slice %283 {offsets = [0, 32], sizes = [8, 32], strides = [1, 1]} : vector<8x128xf32> to vector<8x32xf32>
    %286 = vector.extract_strided_slice %283 {offsets = [0, 64], sizes = [8, 32], strides = [1, 1]} : vector<8x128xf32> to vector<8x32xf32>
    %cst_62 = arith.constant 2.000000e+00 : f32
    %287 = vector.broadcast %cst_62 : f32 to vector<8x32xf32>
    %288 = arith.mulf %287, %286 : vector<8x32xf32>
    %cst_63 = arith.constant 1.000000e+00 : f32
    %289 = vector.broadcast %cst_63 : f32 to vector<8x32xf32>
    %290 = arith.subf %288, %289 : vector<8x32xf32>
    %291 = vector.extract_strided_slice %283 {offsets = [0, 96], sizes = [8, 32], strides = [1, 1]} : vector<8x128xf32> to vector<8x32xf32>
    %292 = arith.mulf %285, %250 : vector<8x32xf32>
    %293 = arith.mulf %284, %290 : vector<8x32xf32>
    %294 = arith.addf %292, %293 : vector<8x32xf32>
    %295 = math.tanh %294 : vector<8x32xf32>
    %296 = arith.mulf %291, %295 : vector<8x32xf32>
    %297 = tpu.concatenate %296, %275 in 1 : vector<8x32xf32>, vector<8x32xf32> -> vector<8x64xf32>
    %298 = arith.truncf %297 : vector<8x64xf32> to vector<8x64xbf16>
    %cst_64 = arith.constant dense<0.000000e+00> : vector<8x128xf32>
    %299 = tpu.matmul %298, %5, %cst_64 {dimension_numbers = #tpu.dot_dimension_numbers<[1], [0], [0], [1], [0, 0, 1, 1], [], []>} : vector<8x64xbf16>, vector<64x128xbf16>, vector<8x128xf32> -> vector<8x128xf32>
    %300 = vector.broadcast %7 : vector<1x128xf32> to vector<8x128xf32>
    %301 = arith.addf %299, %300 : vector<8x128xf32>
    %302 = arith.negf %301 : vector<8x128xf32>
    %303 = math.exp %302 : vector<8x128xf32>
    %cst_65 = arith.constant 1.000000e+00 : f32
    %304 = vector.broadcast %cst_65 : f32 to vector<8x128xf32>
    %305 = arith.addf %304, %303 : vector<8x128xf32>
    %306 = arith.divf %304, %305 : vector<8x128xf32>
    %307 = vector.extract_strided_slice %306 {offsets = [0, 0], sizes = [8, 32], strides = [1, 1]} : vector<8x128xf32> to vector<8x32xf32>
    %308 = vector.extract_strided_slice %306 {offsets = [0, 32], sizes = [8, 32], strides = [1, 1]} : vector<8x128xf32> to vector<8x32xf32>
    %309 = vector.extract_strided_slice %306 {offsets = [0, 64], sizes = [8, 32], strides = [1, 1]} : vector<8x128xf32> to vector<8x32xf32>
    %cst_66 = arith.constant 2.000000e+00 : f32
    %310 = vector.broadcast %cst_66 : f32 to vector<8x32xf32>
    %311 = arith.mulf %310, %309 : vector<8x32xf32>
    %cst_67 = arith.constant 1.000000e+00 : f32
    %312 = vector.broadcast %cst_67 : f32 to vector<8x32xf32>
    %313 = arith.subf %311, %312 : vector<8x32xf32>
    %314 = vector.extract_strided_slice %306 {offsets = [0, 96], sizes = [8, 32], strides = [1, 1]} : vector<8x128xf32> to vector<8x32xf32>
    %315 = arith.mulf %308, %273 : vector<8x32xf32>
    %316 = arith.mulf %307, %313 : vector<8x32xf32>
    %317 = arith.addf %315, %316 : vector<8x32xf32>
    %318 = math.tanh %317 : vector<8x32xf32>
    %319 = arith.mulf %314, %318 : vector<8x32xf32>
    %320 = arith.truncf %296 : vector<8x32xf32> to vector<8x32xbf16>
    %cst_68 = arith.constant dense<0.000000e+00> : vector<8x128xf32>
    %321 = tpu.matmul %320, %3, %cst_68 {dimension_numbers = #tpu.dot_dimension_numbers<[1], [0], [0], [1], [0, 0, 1, 1], [], []>} : vector<8x32xbf16>, vector<32x128xbf16>, vector<8x128xf32> -> vector<8x128xf32>
    %322 = arith.addf %46, %321 : vector<8x128xf32>
    %323 = arith.negf %322 : vector<8x128xf32>
    %324 = math.exp %323 : vector<8x128xf32>
    %cst_69 = arith.constant 1.000000e+00 : f32
    %325 = vector.broadcast %cst_69 : f32 to vector<8x128xf32>
    %326 = arith.addf %325, %324 : vector<8x128xf32>
    %327 = arith.divf %325, %326 : vector<8x128xf32>
    %328 = vector.extract_strided_slice %327 {offsets = [0, 0], sizes = [8, 32], strides = [1, 1]} : vector<8x128xf32> to vector<8x32xf32>
    %329 = vector.extract_strided_slice %327 {offsets = [0, 32], sizes = [8, 32], strides = [1, 1]} : vector<8x128xf32> to vector<8x32xf32>
    %330 = vector.extract_strided_slice %327 {offsets = [0, 64], sizes = [8, 32], strides = [1, 1]} : vector<8x128xf32> to vector<8x32xf32>
    %cst_70 = arith.constant 2.000000e+00 : f32
    %331 = vector.broadcast %cst_70 : f32 to vector<8x32xf32>
    %332 = arith.mulf %331, %330 : vector<8x32xf32>
    %cst_71 = arith.constant 1.000000e+00 : f32
    %333 = vector.broadcast %cst_71 : f32 to vector<8x32xf32>
    %334 = arith.subf %332, %333 : vector<8x32xf32>
    %335 = vector.extract_strided_slice %327 {offsets = [0, 96], sizes = [8, 32], strides = [1, 1]} : vector<8x128xf32> to vector<8x32xf32>
    %336 = arith.mulf %329, %294 : vector<8x32xf32>
    %337 = arith.mulf %328, %334 : vector<8x32xf32>
    %338 = arith.addf %336, %337 : vector<8x32xf32>
    %339 = math.tanh %338 : vector<8x32xf32>
    %340 = arith.mulf %335, %339 : vector<8x32xf32>
    %341 = tpu.concatenate %340, %319 in 1 : vector<8x32xf32>, vector<8x32xf32> -> vector<8x64xf32>
    %342 = arith.truncf %341 : vector<8x64xf32> to vector<8x64xbf16>
    %cst_72 = arith.constant dense<0.000000e+00> : vector<8x128xf32>
    %343 = tpu.matmul %342, %5, %cst_72 {dimension_numbers = #tpu.dot_dimension_numbers<[1], [0], [0], [1], [0, 0, 1, 1], [], []>} : vector<8x64xbf16>, vector<64x128xbf16>, vector<8x128xf32> -> vector<8x128xf32>
    %344 = vector.broadcast %7 : vector<1x128xf32> to vector<8x128xf32>
    %345 = arith.addf %343, %344 : vector<8x128xf32>
    %346 = arith.negf %345 : vector<8x128xf32>
    %347 = math.exp %346 : vector<8x128xf32>
    %cst_73 = arith.constant 1.000000e+00 : f32
    %348 = vector.broadcast %cst_73 : f32 to vector<8x128xf32>
    %349 = arith.addf %348, %347 : vector<8x128xf32>
    %350 = arith.divf %348, %349 : vector<8x128xf32>
    %351 = vector.extract_strided_slice %350 {offsets = [0, 0], sizes = [8, 32], strides = [1, 1]} : vector<8x128xf32> to vector<8x32xf32>
    %352 = vector.extract_strided_slice %350 {offsets = [0, 32], sizes = [8, 32], strides = [1, 1]} : vector<8x128xf32> to vector<8x32xf32>
    %353 = vector.extract_strided_slice %350 {offsets = [0, 64], sizes = [8, 32], strides = [1, 1]} : vector<8x128xf32> to vector<8x32xf32>
    %cst_74 = arith.constant 2.000000e+00 : f32
    %354 = vector.broadcast %cst_74 : f32 to vector<8x32xf32>
    %355 = arith.mulf %354, %353 : vector<8x32xf32>
    %cst_75 = arith.constant 1.000000e+00 : f32
    %356 = vector.broadcast %cst_75 : f32 to vector<8x32xf32>
    %357 = arith.subf %355, %356 : vector<8x32xf32>
    %358 = vector.extract_strided_slice %350 {offsets = [0, 96], sizes = [8, 32], strides = [1, 1]} : vector<8x128xf32> to vector<8x32xf32>
    %359 = arith.mulf %352, %317 : vector<8x32xf32>
    %360 = arith.mulf %351, %357 : vector<8x32xf32>
    %361 = arith.addf %359, %360 : vector<8x32xf32>
    %362 = math.tanh %361 : vector<8x32xf32>
    %363 = arith.mulf %358, %362 : vector<8x32xf32>
    %364 = arith.truncf %340 : vector<8x32xf32> to vector<8x32xbf16>
    %cst_76 = arith.constant dense<0.000000e+00> : vector<8x128xf32>
    %365 = tpu.matmul %364, %3, %cst_76 {dimension_numbers = #tpu.dot_dimension_numbers<[1], [0], [0], [1], [0, 0, 1, 1], [], []>} : vector<8x32xbf16>, vector<32x128xbf16>, vector<8x128xf32> -> vector<8x128xf32>
    %366 = arith.addf %51, %365 : vector<8x128xf32>
    %367 = arith.negf %366 : vector<8x128xf32>
    %368 = math.exp %367 : vector<8x128xf32>
    %cst_77 = arith.constant 1.000000e+00 : f32
    %369 = vector.broadcast %cst_77 : f32 to vector<8x128xf32>
    %370 = arith.addf %369, %368 : vector<8x128xf32>
    %371 = arith.divf %369, %370 : vector<8x128xf32>
    %372 = vector.extract_strided_slice %371 {offsets = [0, 0], sizes = [8, 32], strides = [1, 1]} : vector<8x128xf32> to vector<8x32xf32>
    %373 = vector.extract_strided_slice %371 {offsets = [0, 32], sizes = [8, 32], strides = [1, 1]} : vector<8x128xf32> to vector<8x32xf32>
    %374 = vector.extract_strided_slice %371 {offsets = [0, 64], sizes = [8, 32], strides = [1, 1]} : vector<8x128xf32> to vector<8x32xf32>
    %cst_78 = arith.constant 2.000000e+00 : f32
    %375 = vector.broadcast %cst_78 : f32 to vector<8x32xf32>
    %376 = arith.mulf %375, %374 : vector<8x32xf32>
    %cst_79 = arith.constant 1.000000e+00 : f32
    %377 = vector.broadcast %cst_79 : f32 to vector<8x32xf32>
    %378 = arith.subf %376, %377 : vector<8x32xf32>
    %379 = vector.extract_strided_slice %371 {offsets = [0, 96], sizes = [8, 32], strides = [1, 1]} : vector<8x128xf32> to vector<8x32xf32>
    %380 = arith.mulf %373, %338 : vector<8x32xf32>
    %381 = arith.mulf %372, %378 : vector<8x32xf32>
    %382 = arith.addf %380, %381 : vector<8x32xf32>
    %383 = math.tanh %382 : vector<8x32xf32>
    %384 = arith.mulf %379, %383 : vector<8x32xf32>
    %385 = tpu.concatenate %384, %363 in 1 : vector<8x32xf32>, vector<8x32xf32> -> vector<8x64xf32>
    %386 = arith.truncf %385 : vector<8x64xf32> to vector<8x64xbf16>
    %cst_80 = arith.constant dense<0.000000e+00> : vector<8x128xf32>
    %387 = tpu.matmul %386, %5, %cst_80 {dimension_numbers = #tpu.dot_dimension_numbers<[1], [0], [0], [1], [0, 0, 1, 1], [], []>} : vector<8x64xbf16>, vector<64x128xbf16>, vector<8x128xf32> -> vector<8x128xf32>
    %388 = vector.broadcast %7 : vector<1x128xf32> to vector<8x128xf32>
    %389 = arith.addf %387, %388 : vector<8x128xf32>
    %390 = arith.negf %389 : vector<8x128xf32>
    %391 = math.exp %390 : vector<8x128xf32>
    %cst_81 = arith.constant 1.000000e+00 : f32
    %392 = vector.broadcast %cst_81 : f32 to vector<8x128xf32>
    %393 = arith.addf %392, %391 : vector<8x128xf32>
    %394 = arith.divf %392, %393 : vector<8x128xf32>
    %395 = vector.extract_strided_slice %394 {offsets = [0, 0], sizes = [8, 32], strides = [1, 1]} : vector<8x128xf32> to vector<8x32xf32>
    %396 = vector.extract_strided_slice %394 {offsets = [0, 32], sizes = [8, 32], strides = [1, 1]} : vector<8x128xf32> to vector<8x32xf32>
    %397 = vector.extract_strided_slice %394 {offsets = [0, 64], sizes = [8, 32], strides = [1, 1]} : vector<8x128xf32> to vector<8x32xf32>
    %cst_82 = arith.constant 2.000000e+00 : f32
    %398 = vector.broadcast %cst_82 : f32 to vector<8x32xf32>
    %399 = arith.mulf %398, %397 : vector<8x32xf32>
    %cst_83 = arith.constant 1.000000e+00 : f32
    %400 = vector.broadcast %cst_83 : f32 to vector<8x32xf32>
    %401 = arith.subf %399, %400 : vector<8x32xf32>
    %402 = vector.extract_strided_slice %394 {offsets = [0, 96], sizes = [8, 32], strides = [1, 1]} : vector<8x128xf32> to vector<8x32xf32>
    %403 = arith.mulf %396, %361 : vector<8x32xf32>
    %404 = arith.mulf %395, %401 : vector<8x32xf32>
    %405 = arith.addf %403, %404 : vector<8x32xf32>
    %406 = math.tanh %405 : vector<8x32xf32>
    %407 = arith.mulf %402, %406 : vector<8x32xf32>
    %c112 = arith.constant 112 : index
    %c0_84 = arith.constant 0 : index
    %408 = vector.load %arg2[%c112, %c0_84] : memref<120x128xf32, #tpu.memory_space<vmem>>, vector<1x32xf32>
    %409 = vector.broadcast %408 : vector<1x32xf32> to vector<8x32xf32>
    %410 = arith.mulf %407, %409 : vector<8x32xf32>
    %cst_85 = arith.constant dense<0.000000e+00> : vector<8xf32>
    %411 = vector.multi_reduction <add>, %410, %cst_85 [1] : vector<8x32xf32> to vector<8xf32>
    %412 = vector.shape_cast %411 : vector<8xf32> to vector<8x1xf32>
    %413 = vector.broadcast %8 : vector<1x1xf32> to vector<8x1xf32>
    %414 = arith.addf %412, %413 : vector<8x1xf32>
    %415 = vector.extract_strided_slice %414 {offsets = [0, 0], sizes = [2, 1], strides = [1, 1]} : vector<8x1xf32> to vector<2x1xf32>
    %c0_86 = arith.constant 0 : index
    %c0_87 = arith.constant 0 : index
    %416 = vector.load %arg3[%c0_86, %c0_87] : memref<2x1xf32, #tpu.memory_space<vmem>>, vector<2x1xf32>
    tpu.vector_store %arg3[%c0_86, %c0_87], %415 {strides = array<i32>} : memref<2x1xf32, #tpu.memory_space<vmem>>, vector<2x1xf32>,
    return
  }
  func.func @transform_0(%arg0: i32) -> (i32, i32) {
    %c0_i32 = arith.constant 0 : i32
    %c0_i32_0 = arith.constant 0 : i32
    %c0_i32_1 = arith.constant 0 : i32
    return %c0_i32, %c0_i32_0 : i32, i32
  }
  func.func @transform_1(%arg0: i32) -> (i32, i32) {
    %c0_i32 = arith.constant 0 : i32
    %c0_i32_0 = arith.constant 0 : i32
    %c0_i32_1 = arith.constant 0 : i32
    return %c0_i32, %c0_i32_0 : i32, i32
  }
  func.func @transform_2(%arg0: i32) -> (i32, i32) {
    %c0_i32 = arith.constant 0 : i32
    %c0_i32_0 = arith.constant 0 : i32
    %c0_i32_1 = arith.constant 0 : i32
    return %c0_i32, %c0_i32_0 : i32, i32
  }
}

</mosaic_0001>

<llo_original>
// kernel: stock_lstm_forward.1
$region0: #{stock_lstm_forward.1}
  #allocation0 [shape = 'u32[]', space=smem, size = 0x4, offset = 0x4, fixed_abs, tag = 'smem constant byte address 0x4 - core index']
  #allocation1 [shape = 'u32[144,128]{1,0:T(1,128)}', space=vmem, size = 0x12000, scoped, tag = 'internal scratch']
  %s0 = inlined_call_operand.vmem [shape: f32[2,32], index: 0, kind: input, shape index: {}]
  %s1 = inlined_call_operand.hbm [shape: f32[120,128], index: 1, kind: input, shape index: {}]
  %s2 = inlined_call_operand.vmem [shape: f32[2,1], index: 2, kind: output, shape index: {}]
  %s3 = sld [smem:[#allocation0]]
  $region22: #{stock_lstm_forward.1} parent=0
    _
  %s5 = ssub.s32 1, %s3
  %s6 = scalar_select 0, %s5, %s3
  $region1: #{stock_lstm_forward.1} parent=0
    #allocation2 [shape = 'u8[61440]{0}', space=vmem, size = 0xf000, scoped, tag = 'input window, operand 1, single buffered']
    #allocation3 [shape = 's32[1]{0}', space=sflag, size = 0x4, scoped, tag = 'scoped memory for stock_lstm_forward.1']
    %7 = vsyncpa [#allocation3], 0
    // Predicated region
    $region2: #{stock_lstm_forward.1} parent=1 // pred_check
      _
    $region3: #{stock_lstm_forward.1} parent=1 // pred_check_branch
      %9 = sbr.rel (0) target = $region5
    $region4: #{stock_lstm_forward.1} parent=1 // pred_region
      _
    $region5: #{stock_lstm_forward.1} parent=1 // pred_fallthru
      _
    // Predicated region
    $region6: #{stock_lstm_forward.1} parent=1 // pred_check
      _
    $region7: #{stock_lstm_forward.1} parent=1 // pred_check_branch
      %11 = sbr.rel (0) target = $region9
    $region8: #{stock_lstm_forward.1} parent=1 // pred_region
      %s13 = ssub.s32 1920, 1920
      %14 = vsyncadd [#allocation3], %s13
      %s15 = sshll.u32 [#allocation2], 4
      %s16 = int_to_ptr.vmem [resolvable:$true] %s15
      %21 = dma.hbm_to_vmem [thread:$0]  %s1, 1920, %s16, [#allocation3], 128, 128, 8
    $region9: #{stock_lstm_forward.1} parent=1 // pred_fallthru
      _
    // Predicated region
    $region10: #{stock_lstm_forward.1} parent=1 // pred_check
      _
    $region11: #{stock_lstm_forward.1} parent=1 // pred_check_branch
      %23 = sbr.rel (0) target = $region13
    $region12: #{stock_lstm_forward.1} parent=1 // pred_region
      %24 = dma.done [#allocation3], 1920
    $region13: #{stock_lstm_forward.1} parent=1 // pred_fallthru
      _
    %v26 = vld [vmem:[#allocation2] sm:$0xf]
    %v27 = vpack.c.bf16 %v26, %v26
    %v28 = vld [vmem:[#allocation2 + $0x8] sm:$0xff]
    %v29 = vld [vmem:[#allocation2 + $0x10] sm:$0xff]
    %v30 = vld [vmem:[#allocation2 + $0x18] sm:$0xff]
    %v31 = vld [vmem:[#allocation2 + $0x20] sm:$0xff]
    %v32 = vpack.c.bf16 %v29, %v28
    %v33 = vpack.c.bf16 %v31, %v30
    %v34 = vld [vmem:[#allocation2 + $0x28] sm:$0xff]
    %v35 = vld [vmem:[#allocation2 + $0x30] sm:$0xff]
    %v36 = vld [vmem:[#allocation2 + $0x38] sm:$0xff]
    %v37 = vld [vmem:[#allocation2 + $0x40] sm:$0xff]
    %v38 = vld [vmem:[#allocation2 + $0x48] sm:$0xff]
    %v39 = vld [vmem:[#allocation2 + $0x50] sm:$0xff]
    %v40 = vld [vmem:[#allocation2 + $0x58] sm:$0xff]
    %v41 = vld [vmem:[#allocation2 + $0x60] sm:$0xff]
    %v42 = vpack.c.bf16 %v35, %v34
    %v43 = vpack.c.bf16 %v37, %v36
    %v44 = vpack.c.bf16 %v39, %v38
    %v45 = vpack.c.bf16 %v41, %v40
    %v46 = vld [vmem:[#allocation2 + $0x68] sm:$0x1]
    %v47 = vld [vmem:[#allocation2 + $0x69] sm:$0x1]
    %v48 = vld [vmem:[#allocation2 + $0x6a] sm:$0x1]
    %v49 = vld [vmem:[%s0] sm:$0x3]
    %vm50 = vcmask 1041408
    %v51 = vsel %vm50, %v49, 0.0
    %v52 = vpack.c.bf16 %v51, %v51
    %v53 = vlaneseq
    %v54 = vshrl.u32 %v53, 7
    %v55 = vsub.s32 0, %v54
    %v56 = vrot.slane %v46, %v55
    %vm57 = vcmask 31744
    %v59 = vsel %vm57, %v52, 0
    %v62 = vsel %vm50, %v27, 0
    %64 = vmatprep.subr.bf16.mxu0 0
    %65 = vmatpush1.bf16.msra.mxu0 0
    %66 = vmatprep.subr.bf16.mxu0 0
    %67 = vmatpush1.bf16.msra.mxu0 0
    %68 = vmatprep.subr.bf16.mxu0 0
    %69 = vmatpush1.bf16.msra.mxu0 0
    %70 = vmatprep.subr.bf16.mxu0 0
    %71 = vmatpush1.bf16.msra.mxu0 0
    %72 = vmatprep.subr.bf16.mxu0 0
    %73 = vmatpush1.bf16.msra.mxu0 0
    %74 = vmatprep.subr.bf16.mxu0 0
    %75 = vmatpush1.bf16.msra.mxu0 0
    %76 = vmatprep.subr.bf16.mxu0 0
    %77 = vmatpush1.bf16.msra.mxu0 0
    %78 = vmatprep.subr.bf16.mxu0 0
    %79 = vmatpush1.bf16.msra.mxu0 %v62
    %80 = vmatprep.subr.bf16.mxu0 0
    %81 = vmatpush2.bf16.msra.mxu0 0
    %82 = vmatprep.subr.bf16.mxu0 0
    %83 = vmatpush2.bf16.msra.mxu0 0
    %84 = vmatprep.subr.bf16.mxu0 0
    %85 = vmatpush2.bf16.msra.mxu0 0
    %86 = vmatprep.subr.bf16.mxu0 0
    %87 = vmatpush2.bf16.msra.mxu0 0
    %88 = vmatprep.subr.bf16.mxu0 0
    %89 = vmatpush2.bf16.msra.mxu0 0
    %90 = vmatprep.subr.bf16.mxu0 0
    %91 = vmatpush2.bf16.msra.mxu0 0
    %92 = vmatprep.subr.bf16.mxu0 0
    %93 = vmatpush2.bf16.msra.mxu0 0
    %94 = vmatprep.subr.bf16.mxu0 0
    %95 = vmatpush2.bf16.msra.mxu0 0
    %96 = vmatprep.mubr.bf16.mxu0 0
    %97 = vmatmul.mubr.bf16.gmra.mxu0 %v59
    %v98 = vpop.f32.mrf.mxu0
    %v99 = vadd.f32 %v56, %v98
    %v100 = vpop.f32.mrf.mxu0
    %v101 = vpop.f32.mrf.mxu0
    %v102 = vpop.f32.mrf.mxu0
    %103 = vdwg.mxu0
    %105 = vrot.lane.b32.xlu0 %v52, 124
    %v106 = vpop.permute.xlu0 %105
    %v108 = vsel %vm57, %v106, 0
    %110 = vmatprep.subr.bf16.mxu0 0
    %111 = vmatpush1.bf16.msra.mxu0 0
    %112 = vmatprep.subr.bf16.mxu0 0
    %113 = vmatpush1.bf16.msra.mxu0 0
    %114 = vmatprep.subr.bf16.mxu0 0
    %115 = vmatpush1.bf16.msra.mxu0 0
    %116 = vmatprep.subr.bf16.mxu0 0
    %117 = vmatpush1.bf16.msra.mxu0 0
    %118 = vmatprep.subr.bf16.mxu0 0
    %119 = vmatpush1.bf16.msra.mxu0 0
    %120 = vmatprep.subr.bf16.mxu0 0
    %121 = vmatpush1.bf16.msra.mxu0 0
    %122 = vmatprep.subr.bf16.mxu0 0
    %123 = vmatpush1.bf16.msra.mxu0 0
    %124 = vmatprep.subr.bf16.mxu0 0
    %125 = vmatpush1.bf16.msra.mxu0 %v62
    %126 = vmatprep.subr.bf16.mxu0 0
    %127 = vmatpush2.bf16.msra.mxu0 0
    %128 = vmatprep.subr.bf16.mxu0 0
    %129 = vmatpush2.bf16.msra.mxu0 0
    %130 = vmatprep.subr.bf16.mxu0 0
    %131 = vmatpush2.bf16.msra.mxu0 0
    %132 = vmatprep.subr.bf16.mxu0 0
    %133 = vmatpush2.bf16.msra.mxu0 0
    %134 = vmatprep.subr.bf16.mxu0 0
    %135 = vmatpush2.bf16.msra.mxu0 0
    %136 = vmatprep.subr.bf16.mxu0 0
    %137 = vmatpush2.bf16.msra.mxu0 0
    %138 = vmatprep.subr.bf16.mxu0 0
    %139 = vmatpush2.bf16.msra.mxu0 0
    %140 = vmatprep.subr.bf16.mxu0 0
    %141 = vmatpush2.bf16.msra.mxu0 0
    %142 = vmatprep.mubr.bf16.mxu0 0
    %143 = vmatmul.mubr.bf16.gmra.mxu0 %v108
    %v144 = vpop.f32.mrf.mxu0
    %v145 = vadd.f32 %v56, %v144
    %v146 = vpop.f32.mrf.mxu0
    %v147 = vpop.f32.mrf.mxu0
    %v148 = vpop.f32.mrf.mxu0
    %149 = vdwg.mxu0
    %150 = vrot.lane.b32.xlu0 %v52, 120
    %v151 = vpop.permute.xlu0 %150
    %v153 = vsel %vm57, %v151, 0
    %155 = vmatprep.subr.bf16.mxu0 0
    %156 = vmatpush1.bf16.msra.mxu0 0
    %157 = vmatprep.subr.bf16.mxu0 0
    %158 = vmatpush1.bf16.msra.mxu0 0
    %159 = vmatprep.subr.bf16.mxu0 0
    %160 = vmatpush1.bf16.msra.mxu0 0
    %161 = vmatprep.subr.bf16.mxu0 0
    %162 = vmatpush1.bf16.msra.mxu0 0
    %163 = vmatprep.subr.bf16.mxu0 0
    %164 = vmatpush1.bf16.msra.mxu0 0
    %165 = vmatprep.subr.bf16.mxu0 0
    %166 = vmatpush1.bf16.msra.mxu0 0
    %167 = vmatprep.subr.bf16.mxu0 0
    %168 = vmatpush1.bf16.msra.mxu0 0
    %169 = vmatprep.subr.bf16.mxu0 0
    %170 = vmatpush1.bf16.msra.mxu0 %v62
    %171 = vmatprep.subr.bf16.mxu0 0
    %172 = vmatpush2.bf16.msra.mxu0 0
    %173 = vmatprep.subr.bf16.mxu0 0
    %174 = vmatpush2.bf16.msra.mxu0 0
    %175 = vmatprep.subr.bf16.mxu0 0
    %176 = vmatpush2.bf16.msra.mxu0 0
    %177 = vmatprep.subr.bf16.mxu0 0
    %178 = vmatpush2.bf16.msra.mxu0 0
    %179 = vmatprep.subr.bf16.mxu0 0
    %180 = vmatpush2.bf16.msra.mxu0 0
    %181 = vmatprep.subr.bf16.mxu0 0
    %182 = vmatpush2.bf16.msra.mxu0 0
    %183 = vmatprep.subr.bf16.mxu0 0
    %184 = vmatpush2.bf16.msra.mxu0 0
    %185 = vmatprep.subr.bf16.mxu0 0
    %186 = vmatpush2.bf16.msra.mxu0 0
    %187 = vmatprep.mubr.bf16.mxu0 0
    %188 = vmatmul.mubr.bf16.gmra.mxu0 %v153
    %v189 = vpop.f32.mrf.mxu0
    %v190 = vadd.f32 %v56, %v189
    %v191 = vpop.f32.mrf.mxu0
    %v192 = vpop.f32.mrf.mxu0
    %v193 = vpop.f32.mrf.mxu0
    %194 = vdwg.mxu0
    %195 = vrot.lane.b32.xlu0 %v52, 116
    %v196 = vpop.permute.xlu0 %195
    %v198 = vsel %vm57, %v196, 0
    %200 = vmatprep.subr.bf16.mxu0 0
    %201 = vmatpush1.bf16.msra.mxu0 0
    %202 = vmatprep.subr.bf16.mxu0 0
    %203 = vmatpush1.bf16.msra.mxu0 0
    %204 = vmatprep.subr.bf16.mxu0 0
    %205 = vmatpush1.bf16.msra.mxu0 0
    %206 = vmatprep.subr.bf16.mxu0 0
    %207 = vmatpush1.bf16.msra.mxu0 0
    %208 = vmatprep.subr.bf16.mxu0 0
    %209 = vmatpush1.bf16.msra.mxu0 0
    %210 = vmatprep.subr.bf16.mxu0 0
    %211 = vmatpush1.bf16.msra.mxu0 0
    %212 = vmatprep.subr.bf16.mxu0 0
    %213 = vmatpush1.bf16.msra.mxu0 0
    %214 = vmatprep.subr.bf16.mxu0 0
    %215 = vmatpush1.bf16.msra.mxu0 %v62
    %216 = vmatprep.subr.bf16.mxu0 0
    %217 = vmatpush2.bf16.msra.mxu0 0
    %218 = vmatprep.subr.bf16.mxu0 0
    %219 = vmatpush2.bf16.msra.mxu0 0
    %220 = vmatprep.subr.bf16.mxu0 0
    %221 = vmatpush2.bf16.msra.mxu0 0
    %222 = vmatprep.subr.bf16.mxu0 0
    %223 = vmatpush2.bf16.msra.mxu0 0
    %224 = vmatprep.subr.bf16.mxu0 0
    %225 = vmatpush2.bf16.msra.mxu0 0
    %226 = vmatprep.subr.bf16.mxu0 0
    %227 = vmatpush2.bf16.msra.mxu0 0
    %228 = vmatprep.subr.bf16.mxu0 0
    %229 = vmatpush2.bf16.msra.mxu0 0
    %230 = vmatprep.subr.bf16.mxu0 0
    %231 = vmatpush2.bf16.msra.mxu0 0
    %232 = vmatprep.mubr.bf16.mxu0 0
    %233 = vmatmul.mubr.bf16.gmra.mxu0 %v198
    %v234 = vpop.f32.mrf.mxu0
    %v235 = vadd.f32 %v56, %v234
    %v236 = vpop.f32.mrf.mxu0
    %v237 = vpop.f32.mrf.mxu0
    %v238 = vpop.f32.mrf.mxu0
    %239 = vdwg.mxu0
    %240 = vrot.lane.b32.xlu0 %v52, 112
    %v241 = vpop.permute.xlu0 %240
    %v243 = vsel %vm57, %v241, 0
    %245 = vmatprep.subr.bf16.mxu0 0
    %246 = vmatpush1.bf16.msra.mxu0 0
    %247 = vmatprep.subr.bf16.mxu0 0
    %248 = vmatpush1.bf16.msra.mxu0 0
    %249 = vmatprep.subr.bf16.mxu0 0
    %250 = vmatpush1.bf16.msra.mxu0 0
    %251 = vmatprep.subr.bf16.mxu0 0
    %252 = vmatpush1.bf16.msra.mxu0 0
    %253 = vmatprep.subr.bf16.mxu0 0
    %254 = vmatpush1.bf16.msra.mxu0 0
    %255 = vmatprep.subr.bf16.mxu0 0
    %256 = vmatpush1.bf16.msra.mxu0 0
    %257 = vmatprep.subr.bf16.mxu0 0
    %258 = vmatpush1.bf16.msra.mxu0 0
    %259 = vmatprep.subr.bf16.mxu0 0
    %260 = vmatpush1.bf16.msra.mxu0 %v62
    %261 = vmatprep.subr.bf16.mxu0 0
    %262 = vmatpush2.bf16.msra.mxu0 0
    %263 = vmatprep.subr.bf16.mxu0 0
    %264 = vmatpush2.bf16.msra.mxu0 0
    %265 = vmatprep.subr.bf16.mxu0 0
    %266 = vmatpush2.bf16.msra.mxu0 0
    %267 = vmatprep.subr.bf16.mxu0 0
    %268 = vmatpush2.bf16.msra.mxu0 0
    %269 = vmatprep.subr.bf16.mxu0 0
    %270 = vmatpush2.bf16.msra.mxu0 0
    %271 = vmatprep.subr.bf16.mxu0 0
    %272 = vmatpush2.bf16.msra.mxu0 0
    %273 = vmatprep.subr.bf16.mxu0 0
    %274 = vmatpush2.bf16.msra.mxu0 0
    %275 = vmatprep.subr.bf16.mxu0 0
    %276 = vmatpush2.bf16.msra.mxu0 0
    %277 = vmatprep.mubr.bf16.mxu0 0
    %278 = vmatmul.mubr.bf16.gmra.mxu0 %v243
    %v279 = vpop.f32.mrf.mxu0
    %v280 = vadd.f32 %v56, %v279
    %v281 = vpop.f32.mrf.mxu0
    %v282 = vpop.f32.mrf.mxu0
    %v283 = vpop.f32.mrf.mxu0
    %284 = vdwg.mxu0
    %285 = vrot.lane.b32.xlu0 %v52, 108
    %v286 = vpop.permute.xlu0 %285
    %v288 = vsel %vm57, %v286, 0
    %290 = vmatprep.subr.bf16.mxu0 0
    %291 = vmatpush1.bf16.msra.mxu0 0
    %292 = vmatprep.subr.bf16.mxu0 0
    %293 = vmatpush1.bf16.msra.mxu0 0
    %294 = vmatprep.subr.bf16.mxu0 0
    %295 = vmatpush1.bf16.msra.mxu0 0
    %296 = vmatprep.subr.bf16.mxu0 0
    %297 = vmatpush1.bf16.msra.mxu0 0
    %298 = vmatprep.subr.bf16.mxu0 0
    %299 = vmatpush1.bf16.msra.mxu0 0
    %300 = vmatprep.subr.bf16.mxu0 0
    %301 = vmatpush1.bf16.msra.mxu0 0
    %302 = vmatprep.subr.bf16.mxu0 0
    %303 = vmatpush1.bf16.msra.mxu0 0
    %304 = vmatprep.subr.bf16.mxu0 0
    %305 = vmatpush1.bf16.msra.mxu0 %v62
    %306 = vmatprep.subr.bf16.mxu0 0
    %307 = vmatpush2.bf16.msra.mxu0 0
    %308 = vmatprep.subr.bf16.mxu0 0
    %309 = vmatpush2.bf16.msra.mxu0 0
    %310 = vmatprep.subr.bf16.mxu0 0
    %311 = vmatpush2.bf16.msra.mxu0 0
    %312 = vmatprep.subr.bf16.mxu0 0
    %313 = vmatpush2.bf16.msra.mxu0 0
    %314 = vmatprep.subr.bf16.mxu0 0
    %315 = vmatpush2.bf16.msra.mxu0 0
    %316 = vmatprep.subr.bf16.mxu0 0
    %317 = vmatpush2.bf16.msra.mxu0 0
    %318 = vmatprep.subr.bf16.mxu0 0
    %319 = vmatpush2.bf16.msra.mxu0 0
    %320 = vmatprep.subr.bf16.mxu0 0
    %321 = vmatpush2.bf16.msra.mxu0 0
    %322 = vmatprep.mubr.bf16.mxu0 0
    %323 = vmatmul.mubr.bf16.gmra.mxu0 %v288
    %v324 = vpop.f32.mrf.mxu0
    %v325 = vadd.f32 %v56, %v324
    %v326 = vpop.f32.mrf.mxu0
    %v327 = vpop.f32.mrf.mxu0
    %v328 = vpop.f32.mrf.mxu0
    %329 = vdwg.mxu0
    %330 = vrot.lane.b32.xlu0 %v52, 104
    %v331 = vpop.permute.xlu0 %330
    %v333 = vsel %vm57, %v331, 0
    %335 = vmatprep.subr.bf16.mxu0 0
    %336 = vmatpush1.bf16.msra.mxu0 0
    %337 = vmatprep.subr.bf16.mxu0 0
    %338 = vmatpush1.bf16.msra.mxu0 0
    %339 = vmatprep.subr.bf16.mxu0 0
    %340 = vmatpush1.bf16.msra.mxu0 0
    %341 = vmatprep.subr.bf16.mxu0 0
    %342 = vmatpush1.bf16.msra.mxu0 0
    %343 = vmatprep.subr.bf16.mxu0 0
    %344 = vmatpush1.bf16.msra.mxu0 0
    %345 = vmatprep.subr.bf16.mxu0 0
    %346 = vmatpush1.bf16.msra.mxu0 0
    %347 = vmatprep.subr.bf16.mxu0 0
    %348 = vmatpush1.bf16.msra.mxu0 0
    %349 = vmatprep.subr.bf16.mxu0 0
    %350 = vmatpush1.bf16.msra.mxu0 %v62
    %351 = vmatprep.subr.bf16.mxu0 0
    %352 = vmatpush2.bf16.msra.mxu0 0
    %353 = vmatprep.subr.bf16.mxu0 0
    %354 = vmatpush2.bf16.msra.mxu0 0
    %355 = vmatprep.subr.bf16.mxu0 0
    %356 = vmatpush2.bf16.msra.mxu0 0
    %357 = vmatprep.subr.bf16.mxu0 0
    %358 = vmatpush2.bf16.msra.mxu0 0
    %359 = vmatprep.subr.bf16.mxu0 0
    %360 = vmatpush2.bf16.msra.mxu0 0
    %361 = vmatprep.subr.bf16.mxu0 0
    %362 = vmatpush2.bf16.msra.mxu0 0
    %363 = vmatprep.subr.bf16.mxu0 0
    %364 = vmatpush2.bf16.msra.mxu0 0
    %365 = vmatprep.subr.bf16.mxu0 0
    %366 = vmatpush2.bf16.msra.mxu0 0
    %367 = vmatprep.mubr.bf16.mxu0 0
    %368 = vmatmul.mubr.bf16.gmra.mxu0 %v333
    %v369 = vpop.f32.mrf.mxu0
    %v370 = vadd.f32 %v56, %v369
    %v371 = vpop.f32.mrf.mxu0
    %v372 = vpop.f32.mrf.mxu0
    %v373 = vpop.f32.mrf.mxu0
    %374 = vdwg.mxu0
    %375 = vrot.lane.b32.xlu0 %v52, 100
    %v376 = vpop.permute.xlu0 %375
    %v378 = vsel %vm57, %v376, 0
    %380 = vmatprep.subr.bf16.mxu0 0
    %381 = vmatpush1.bf16.msra.mxu0 0
    %382 = vmatprep.subr.bf16.mxu0 0
    %383 = vmatpush1.bf16.msra.mxu0 0
    %384 = vmatprep.subr.bf16.mxu0 0
    %385 = vmatpush1.bf16.msra.mxu0 0
    %386 = vmatprep.subr.bf16.mxu0 0
    %387 = vmatpush1.bf16.msra.mxu0 0
    %388 = vmatprep.subr.bf16.mxu0 0
    %389 = vmatpush1.bf16.msra.mxu0 0
    %390 = vmatprep.subr.bf16.mxu0 0
    %391 = vmatpush1.bf16.msra.mxu0 0
    %392 = vmatprep.subr.bf16.mxu0 0
    %393 = vmatpush1.bf16.msra.mxu0 0
    %394 = vmatprep.subr.bf16.mxu0 0
    %395 = vmatpush1.bf16.msra.mxu0 %v62
    %396 = vmatprep.subr.bf16.mxu0 0
    %397 = vmatpush2.bf16.msra.mxu0 0
    %398 = vmatprep.subr.bf16.mxu0 0
    %399 = vmatpush2.bf16.msra.mxu0 0
    %400 = vmatprep.subr.bf16.mxu0 0
    %401 = vmatpush2.bf16.msra.mxu0 0
    %402 = vmatprep.subr.bf16.mxu0 0
    %403 = vmatpush2.bf16.msra.mxu0 0
    %404 = vmatprep.subr.bf16.mxu0 0
    %405 = vmatpush2.bf16.msra.mxu0 0
    %406 = vmatprep.subr.bf16.mxu0 0
    %407 = vmatpush2.bf16.msra.mxu0 0
    %408 = vmatprep.subr.bf16.mxu0 0
    %409 = vmatpush2.bf16.msra.mxu0 0
    %410 = vmatprep.subr.bf16.mxu0 0
    %411 = vmatpush2.bf16.msra.mxu0 0
    %412 = vmatprep.mubr.bf16.mxu0 0
    %413 = vmatmul.mubr.bf16.gmra.mxu0 %v378
    %v414 = vpop.f32.mrf.mxu0
    %v415 = vadd.f32 %v56, %v414
    %v416 = vpop.f32.mrf.mxu0
    %v417 = vpop.f32.mrf.mxu0
    %v418 = vpop.f32.mrf.mxu0
    %419 = vdwg.mxu0
    %vm420 = vcmask 261120
    %v422 = vsel %vm420, 0, 0
    %424 = vmatprep.subr.bf16.mxu0 0
    %425 = vmatpush1.bf16.msra.mxu0 0
    %426 = vmatprep.subr.bf16.mxu0 0
    %427 = vmatpush1.bf16.msra.mxu0 0
    %428 = vmatprep.subr.bf16.mxu0 0
    %429 = vmatpush1.bf16.msra.mxu0 0
    %430 = vmatprep.subr.bf16.mxu0 0
    %431 = vmatpush1.bf16.msra.mxu0 0
    %432 = vmatprep.subr.bf16.mxu0 0
    %433 = vmatpush1.bf16.msra.mxu0 0
    %434 = vmatprep.subr.bf16.mxu0 0
    %435 = vmatpush1.bf16.msra.mxu0 0
    %436 = vmatprep.subr.bf16.mxu0 0
    %437 = vmatpush1.bf16.msra.mxu0 %v33
    %438 = vmatprep.subr.bf16.mxu0 0
    %439 = vmatpush1.bf16.msra.mxu0 %v32
    %440 = vmatprep.subr.bf16.mxu0 0
    %441 = vmatpush2.bf16.msra.mxu0 0
    %442 = vmatprep.subr.bf16.mxu0 0
    %443 = vmatpush2.bf16.msra.mxu0 0
    %444 = vmatprep.subr.bf16.mxu0 0
    %445 = vmatpush2.bf16.msra.mxu0 0
    %446 = vmatprep.subr.bf16.mxu0 0
    %447 = vmatpush2.bf16.msra.mxu0 0
    %448 = vmatprep.subr.bf16.mxu0 0
    %449 = vmatpush2.bf16.msra.mxu0 0
    %450 = vmatprep.subr.bf16.mxu0 0
    %451 = vmatpush2.bf16.msra.mxu0 0
    %452 = vmatprep.subr.bf16.mxu0 0
    %453 = vmatpush2.bf16.msra.mxu0 0
    %454 = vmatprep.subr.bf16.mxu0 0
    %455 = vmatpush2.bf16.msra.mxu0 0
    %456 = vmatprep.mubr.bf16.mxu0 0
    %457 = vmatmul.mubr.bf16.gmra.mxu0 %v422
    %v458 = vpop.f32.mrf.mxu0
    %v459 = vadd.f32 0.0, %v458
    %v460 = vpop.f32.mrf.mxu0
    %v461 = vpop.f32.mrf.mxu0
    %v462 = vpop.f32.mrf.mxu0
    %463 = vdwg.mxu0
    %v464 = vadd.f32 %v99, %v459
    %v465 = vxor.u32 %v464, 2147483648
    %v466 = vmul.f32 %v465, 1.442695
    %v467 = vpow.pop %v466
    %v468 = vadd.f32 %v467, 1.0
    %v469 = vrcp.pop %v468
    %v470 = vmul.f32 1.0, %v469
    %v471 = vmul.f32 %v470, 2.0
    %v472 = vsub.f32 %v471, 1.0
    %v473 = vmul.f32 %v470, 0.0
    %475 = vrot.lane.b32.xlu0 %v472, 64
    %v476 = vpop.permute.xlu0 %475
    %v478 = vmul.f32 %v470, %v476
    %480 = vrot.lane.b32.xlu0 %v478, 32
    %v481 = vpop.permute.xlu0 %480
    %v483 = vadd.f32 %v473, %v481
    %v484 = vtanh.pop %v483
    %486 = vrot.lane.b32.xlu0 %v484, 64
    %v487 = vpop.permute.xlu0 %486
    %v489 = vmul.f32 %v470, %v487
    %491 = vrot.lane.b32.xlu0 %v489, 32
    %v492 = vpop.permute.xlu0 %491
    %v494 = vsel %vm420, %v492, 0.0
    %v495 = vpack.c.bf16 %v494, %v494
    %v496 = vlaneseq
    %v497 = vshrl.u32 %v496, 7
    %v498 = vsub.s32 0, %v497
    %v499 = vrot.slane %v47, %v498
    %vm500 = vcmask 523264
    %v502 = vsel %vm500, %v495, 0
    %504 = vmatprep.subr.bf16.mxu0 0
    %505 = vmatpush1.bf16.msra.mxu0 0
    %506 = vmatprep.subr.bf16.mxu0 0
    %507 = vmatpush1.bf16.msra.mxu0 0
    %508 = vmatprep.subr.bf16.mxu0 0
    %509 = vmatpush1.bf16.msra.mxu0 0
    %510 = vmatprep.subr.bf16.mxu0 0
    %511 = vmatpush1.bf16.msra.mxu0 0
    %512 = vmatprep.subr.bf16.mxu0 0
    %513 = vmatpush1.bf16.msra.mxu0 %v45
    %514 = vmatprep.subr.bf16.mxu0 0
    %515 = vmatpush1.bf16.msra.mxu0 %v44
    %516 = vmatprep.subr.bf16.mxu0 0
    %517 = vmatpush1.bf16.msra.mxu0 %v43
    %518 = vmatprep.subr.bf16.mxu0 0
    %519 = vmatpush1.bf16.msra.mxu0 %v42
    %520 = vmatprep.subr.bf16.mxu0 0
    %521 = vmatpush2.bf16.msra.mxu0 0
    %522 = vmatprep.subr.bf16.mxu0 0
    %523 = vmatpush2.bf16.msra.mxu0 0
    %524 = vmatprep.subr.bf16.mxu0 0
    %525 = vmatpush2.bf16.msra.mxu0 0
    %526 = vmatprep.subr.bf16.mxu0 0
    %527 = vmatpush2.bf16.msra.mxu0 0
    %528 = vmatprep.subr.bf16.mxu0 0
    %529 = vmatpush2.bf16.msra.mxu0 0
    %530 = vmatprep.subr.bf16.mxu0 0
    %531 = vmatpush2.bf16.msra.mxu0 0
    %532 = vmatprep.subr.bf16.mxu0 0
    %533 = vmatpush2.bf16.msra.mxu0 0
    %534 = vmatprep.subr.bf16.mxu0 0
    %535 = vmatpush2.bf16.msra.mxu0 0
    %536 = vmatprep.mubr.bf16.mxu0 0
    %537 = vmatmul.mubr.bf16.gmra.mxu0 %v502
    %v538 = vpop.f32.mrf.mxu0
    %v539 = vadd.f32 %v499, %v538
    %v540 = vpop.f32.mrf.mxu0
    %v541 = vpop.f32.mrf.mxu0
    %v542 = vpop.f32.mrf.mxu0
    %543 = vdwg.mxu0
    %v544 = vxor.u32 %v539, 2147483648
    %v545 = vmul.f32 %v544, 1.442695
    %v546 = vpow.pop %v545
    %v547 = vadd.f32 %v546, 1.0
    %v548 = vrcp.pop %v547
    %v549 = vmul.f32 1.0, %v548
    %v550 = vmul.f32 %v549, 2.0
    %v551 = vsub.f32 %v550, 1.0
    %v552 = vmul.f32 %v549, 0.0
    %554 = vrot.lane.b32.xlu0 %v551, 64
    %v555 = vpop.permute.xlu0 %554
    %v557 = vmul.f32 %v549, %v555
    %559 = vrot.lane.b32.xlu0 %v557, 32
    %v560 = vpop.permute.xlu0 %559
    %v562 = vadd.f32 %v552, %v560
    %v563 = vtanh.pop %v562
    %565 = vrot.lane.b32.xlu0 %v563, 64
    %v566 = vpop.permute.xlu0 %565
    %v568 = vmul.f32 %v549, %v566
    %v569 = vpack.c.bf16 %v489, %v489
    %571 = vrot.lane.b32.xlu0 %v569, 32
    %v572 = vpop.permute.xlu0 %571
    %v574 = vsel %vm420, %v572, 0
    %576 = vmatprep.subr.bf16.mxu0 0
    %577 = vmatpush1.bf16.msra.mxu0 0
    %578 = vmatprep.subr.bf16.mxu0 0
    %579 = vmatpush1.bf16.msra.mxu0 0
    %580 = vmatprep.subr.bf16.mxu0 0
    %581 = vmatpush1.bf16.msra.mxu0 0
    %582 = vmatprep.subr.bf16.mxu0 0
    %583 = vmatpush1.bf16.msra.mxu0 0
    %584 = vmatprep.subr.bf16.mxu0 0
    %585 = vmatpush1.bf16.msra.mxu0 0
    %586 = vmatprep.subr.bf16.mxu0 0
    %587 = vmatpush1.bf16.msra.mxu0 0
    %588 = vmatprep.subr.bf16.mxu0 0
    %589 = vmatpush1.bf16.msra.mxu0 %v33
    %590 = vmatprep.subr.bf16.mxu0 0
    %591 = vmatpush1.bf16.msra.mxu0 %v32
    %592 = vmatprep.subr.bf16.mxu0 0
    %593 = vmatpush2.bf16.msra.mxu0 0
    %594 = vmatprep.subr.bf16.mxu0 0
    %595 = vmatpush2.bf16.msra.mxu0 0
    %596 = vmatprep.subr.bf16.mxu0 0
    %597 = vmatpush2.bf16.msra.mxu0 0
    %598 = vmatprep.subr.bf16.mxu0 0
    %599 = vmatpush2.bf16.msra.mxu0 0
    %600 = vmatprep.subr.bf16.mxu0 0
    %601 = vmatpush2.bf16.msra.mxu0 0
    %602 = vmatprep.subr.bf16.mxu0 0
    %603 = vmatpush2.bf16.msra.mxu0 0
    %604 = vmatprep.subr.bf16.mxu0 0
    %605 = vmatpush2.bf16.msra.mxu0 0
    %606 = vmatprep.subr.bf16.mxu0 0
    %607 = vmatpush2.bf16.msra.mxu0 0
    %608 = vmatprep.mubr.bf16.mxu0 0
    %609 = vmatmul.mubr.bf16.gmra.mxu0 %v574
    %v610 = vpop.f32.mrf.mxu0
    %v611 = vadd.f32 0.0, %v610
    %v612 = vpop.f32.mrf.mxu0
    %v613 = vpop.f32.mrf.mxu0
    %v614 = vpop.f32.mrf.mxu0
    %615 = vdwg.mxu0
    %v616 = vadd.f32 %v145, %v611
    %v617 = vxor.u32 %v616, 2147483648
    %v618 = vmul.f32 %v617, 1.442695
    %v619 = vpow.pop %v618
    %v620 = vadd.f32 %v619, 1.0
    %v621 = vrcp.pop %v620
    %v622 = vmul.f32 1.0, %v621
    %v623 = vmul.f32 %v622, 2.0
    %v624 = vsub.f32 %v623, 1.0
    %v625 = vmul.f32 %v622, %v483
    %627 = vrot.lane.b32.xlu0 %v624, 64
    %v628 = vpop.permute.xlu0 %627
    %v630 = vmul.f32 %v622, %v628
    %632 = vrot.lane.b32.xlu0 %v630, 32
    %v633 = vpop.permute.xlu0 %632
    %v635 = vadd.f32 %v625, %v633
    %v636 = vtanh.pop %v635
    %638 = vrot.lane.b32.xlu0 %v636, 64
    %v639 = vpop.permute.xlu0 %638
    %v641 = vmul.f32 %v622, %v639
    %643 = vrot.lane.b32.xlu0 %v641, 32
    %v644 = vpop.permute.xlu0 %643
    %647 = vrot.lane.b32.xlu0 %v568, 64
    %v648 = vpop.permute.xlu0 %647
    %v650 = vsel %vm420, %v644, %v648
    %v651 = vpack.c.bf16 %v650, %v650
    %v653 = vsel %vm500, %v651, 0
    %655 = vmatprep.subr.bf16.mxu0 0
    %656 = vmatpush1.bf16.msra.mxu0 0
    %657 = vmatprep.subr.bf16.mxu0 0
    %658 = vmatpush1.bf16.msra.mxu0 0
    %659 = vmatprep.subr.bf16.mxu0 0
    %660 = vmatpush1.bf16.msra.mxu0 0
    %661 = vmatprep.subr.bf16.mxu0 0
    %662 = vmatpush1.bf16.msra.mxu0 0
    %663 = vmatprep.subr.bf16.mxu0 0
    %664 = vmatpush1.bf16.msra.mxu0 %v45
    %665 = vmatprep.subr.bf16.mxu0 0
    %666 = vmatpush1.bf16.msra.mxu0 %v44
    %667 = vmatprep.subr.bf16.mxu0 0
    %668 = vmatpush1.bf16.msra.mxu0 %v43
    %669 = vmatprep.subr.bf16.mxu0 0
    %670 = vmatpush1.bf16.msra.mxu0 %v42
    %671 = vmatprep.subr.bf16.mxu0 0
    %672 = vmatpush2.bf16.msra.mxu0 0
    %673 = vmatprep.subr.bf16.mxu0 0
    %674 = vmatpush2.bf16.msra.mxu0 0
    %675 = vmatprep.subr.bf16.mxu0 0
    %676 = vmatpush2.bf16.msra.mxu0 0
    %677 = vmatprep.subr.bf16.mxu0 0
    %678 = vmatpush2.bf16.msra.mxu0 0
    %679 = vmatprep.subr.bf16.mxu0 0
    %680 = vmatpush2.bf16.msra.mxu0 0
    %681 = vmatprep.subr.bf16.mxu0 0
    %682 = vmatpush2.bf16.msra.mxu0 0
    %683 = vmatprep.subr.bf16.mxu0 0
    %684 = vmatpush2.bf16.msra.mxu0 0
    %685 = vmatprep.subr.bf16.mxu0 0
    %686 = vmatpush2.bf16.msra.mxu0 0
    %687 = vmatprep.mubr.bf16.mxu0 0
    %688 = vmatmul.mubr.bf16.gmra.mxu0 %v653
    %v689 = vpop.f32.mrf.mxu0
    %v690 = vadd.f32 %v499, %v689
    %v691 = vpop.f32.mrf.mxu0
    %v692 = vpop.f32.mrf.mxu0
    %v693 = vpop.f32.mrf.mxu0
    %694 = vdwg.mxu0
    %v695 = vxor.u32 %v690, 2147483648
    %v696 = vmul.f32 %v695, 1.442695
    %v697 = vpow.pop %v696
    %v698 = vadd.f32 %v697, 1.0
    %v699 = vrcp.pop %v698
    %v700 = vmul.f32 1.0, %v699
    %v701 = vmul.f32 %v700, 2.0
    %v702 = vsub.f32 %v701, 1.0
    %v703 = vmul.f32 %v700, %v562
    %705 = vrot.lane.b32.xlu0 %v702, 64
    %v706 = vpop.permute.xlu0 %705
    %v708 = vmul.f32 %v700, %v706
    %710 = vrot.lane.b32.xlu0 %v708, 32
    %v711 = vpop.permute.xlu0 %710
    %v713 = vadd.f32 %v703, %v711
    %v714 = vtanh.pop %v713
    %716 = vrot.lane.b32.xlu0 %v714, 64
    %v717 = vpop.permute.xlu0 %716
    %v719 = vmul.f32 %v700, %v717
    %v720 = vpack.c.bf16 %v641, %v641
    %722 = vrot.lane.b32.xlu0 %v720, 32
    %v723 = vpop.permute.xlu0 %722
    %v725 = vsel %vm420, %v723, 0
    %727 = vmatprep.subr.bf16.mxu0 0
    %728 = vmatpush1.bf16.msra.mxu0 0
    %729 = vmatprep.subr.bf16.mxu0 0
    %730 = vmatpush1.bf16.msra.mxu0 0
    %731 = vmatprep.subr.bf16.mxu0 0
    %732 = vmatpush1.bf16.msra.mxu0 0
    %733 = vmatprep.subr.bf16.mxu0 0
    %734 = vmatpush1.bf16.msra.mxu0 0
    %735 = vmatprep.subr.bf16.mxu0 0
    %736 = vmatpush1.bf16.msra.mxu0 0
    %737 = vmatprep.subr.bf16.mxu0 0
    %738 = vmatpush1.bf16.msra.mxu0 0
    %739 = vmatprep.subr.bf16.mxu0 0
    %740 = vmatpush1.bf16.msra.mxu0 %v33
    %741 = vmatprep.subr.bf16.mxu0 0
    %742 = vmatpush1.bf16.msra.mxu0 %v32
    %743 = vmatprep.subr.bf16.mxu0 0
    %744 = vmatpush2.bf16.msra.mxu0 0
    %745 = vmatprep.subr.bf16.mxu0 0
    %746 = vmatpush2.bf16.msra.mxu0 0
    %747 = vmatprep.subr.bf16.mxu0 0
    %748 = vmatpush2.bf16.msra.mxu0 0
    %749 = vmatprep.subr.bf16.mxu0 0
    %750 = vmatpush2.bf16.msra.mxu0 0
    %751 = vmatprep.subr.bf16.mxu0 0
    %752 = vmatpush2.bf16.msra.mxu0 0
    %753 = vmatprep.subr.bf16.mxu0 0
    %754 = vmatpush2.bf16.msra.mxu0 0
    %755 = vmatprep.subr.bf16.mxu0 0
    %756 = vmatpush2.bf16.msra.mxu0 0
    %757 = vmatprep.subr.bf16.mxu0 0
    %758 = vmatpush2.bf16.msra.mxu0 0
    %759 = vmatprep.mubr.bf16.mxu0 0
    %760 = vmatmul.mubr.bf16.gmra.mxu0 %v725
    %v761 = vpop.f32.mrf.mxu0
    %v762 = vadd.f32 0.0, %v761
    %v763 = vpop.f32.mrf.mxu0
    %v764 = vpop.f32.mrf.mxu0
    %v765 = vpop.f32.mrf.mxu0
    %766 = vdwg.mxu0
    %v767 = vadd.f32 %v190, %v762
    %v768 = vxor.u32 %v767, 2147483648
    %v769 = vmul.f32 %v768, 1.442695
    %v770 = vpow.pop %v769
    %v771 = vadd.f32 %v770, 1.0
    %v772 = vrcp.pop %v771
    %v773 = vmul.f32 1.0, %v772
    %v774 = vmul.f32 %v773, 2.0
    %v775 = vsub.f32 %v774, 1.0
    %v776 = vmul.f32 %v773, %v635
    %778 = vrot.lane.b32.xlu0 %v775, 64
    %v779 = vpop.permute.xlu0 %778
    %v781 = vmul.f32 %v773, %v779
    %783 = vrot.lane.b32.xlu0 %v781, 32
    %v784 = vpop.permute.xlu0 %783
    %v786 = vadd.f32 %v776, %v784
    %v787 = vtanh.pop %v786
    %789 = vrot.lane.b32.xlu0 %v787, 64
    %v790 = vpop.permute.xlu0 %789
    %v792 = vmul.f32 %v773, %v790
    %794 = vrot.lane.b32.xlu0 %v792, 32
    %v795 = vpop.permute.xlu0 %794
    %798 = vrot.lane.b32.xlu0 %v719, 64
    %v799 = vpop.permute.xlu0 %798
    %v801 = vsel %vm420, %v795, %v799
    %v802 = vpack.c.bf16 %v801, %v801
    %v804 = vsel %vm500, %v802, 0
    %806 = vmatprep.subr.bf16.mxu0 0
    %807 = vmatpush1.bf16.msra.mxu0 0
    %808 = vmatprep.subr.bf16.mxu0 0
    %809 = vmatpush1.bf16.msra.mxu0 0
    %810 = vmatprep.subr.bf16.mxu0 0
    %811 = vmatpush1.bf16.msra.mxu0 0
    %812 = vmatprep.subr.bf16.mxu0 0
    %813 = vmatpush1.bf16.msra.mxu0 0
    %814 = vmatprep.subr.bf16.mxu0 0
    %815 = vmatpush1.bf16.msra.mxu0 %v45
    %816 = vmatprep.subr.bf16.mxu0 0
    %817 = vmatpush1.bf16.msra.mxu0 %v44
    %818 = vmatprep.subr.bf16.mxu0 0
    %819 = vmatpush1.bf16.msra.mxu0 %v43
    %820 = vmatprep.subr.bf16.mxu0 0
    %821 = vmatpush1.bf16.msra.mxu0 %v42
    %822 = vmatprep.subr.bf16.mxu0 0
    %823 = vmatpush2.bf16.msra.mxu0 0
    %824 = vmatprep.subr.bf16.mxu0 0
    %825 = vmatpush2.bf16.msra.mxu0 0
    %826 = vmatprep.subr.bf16.mxu0 0
    %827 = vmatpush2.bf16.msra.mxu0 0
    %828 = vmatprep.subr.bf16.mxu0 0
    %829 = vmatpush2.bf16.msra.mxu0 0
    %830 = vmatprep.subr.bf16.mxu0 0
    %831 = vmatpush2.bf16.msra.mxu0 0
    %832 = vmatprep.subr.bf16.mxu0 0
    %833 = vmatpush2.bf16.msra.mxu0 0
    %834 = vmatprep.subr.bf16.mxu0 0
    %835 = vmatpush2.bf16.msra.mxu0 0
    %836 = vmatprep.subr.bf16.mxu0 0
    %837 = vmatpush2.bf16.msra.mxu0 0
    %838 = vmatprep.mubr.bf16.mxu0 0
    %839 = vmatmul.mubr.bf16.gmra.mxu0 %v804
    %v840 = vpop.f32.mrf.mxu0
    %v841 = vadd.f32 %v499, %v840
    %v842 = vpop.f32.mrf.mxu0
    %v843 = vpop.f32.mrf.mxu0
    %v844 = vpop.f32.mrf.mxu0
    %845 = vdwg.mxu0
    %v846 = vxor.u32 %v841, 2147483648
    %v847 = vmul.f32 %v846, 1.442695
    %v848 = vpow.pop %v847
    %v849 = vadd.f32 %v848, 1.0
    %v850 = vrcp.pop %v849
    %v851 = vmul.f32 1.0, %v850
    %v852 = vmul.f32 %v851, 2.0
    %v853 = vsub.f32 %v852, 1.0
    %v854 = vmul.f32 %v851, %v713
    %856 = vrot.lane.b32.xlu0 %v853, 64
    %v857 = vpop.permute.xlu0 %856
    %v859 = vmul.f32 %v851, %v857
    %861 = vrot.lane.b32.xlu0 %v859, 32
    %v862 = vpop.permute.xlu0 %861
    %v864 = vadd.f32 %v854, %v862
    %v865 = vtanh.pop %v864
    %867 = vrot.lane.b32.xlu0 %v865, 64
    %v868 = vpop.permute.xlu0 %867
    %v870 = vmul.f32 %v851, %v868
    %v871 = vpack.c.bf16 %v792, %v792
    %873 = vrot.lane.b32.xlu0 %v871, 32
    %v874 = vpop.permute.xlu0 %873
    %v876 = vsel %vm420, %v874, 0
    %878 = vmatprep.subr.bf16.mxu0 0
    %879 = vmatpush1.bf16.msra.mxu0 0
    %880 = vmatprep.subr.bf16.mxu0 0
    %881 = vmatpush1.bf16.msra.mxu0 0
    %882 = vmatprep.subr.bf16.mxu0 0
    %883 = vmatpush1.bf16.msra.mxu0 0
    %884 = vmatprep.subr.bf16.mxu0 0
    %885 = vmatpush1.bf16.msra.mxu0 0
    %886 = vmatprep.subr.bf16.mxu0 0
    %887 = vmatpush1.bf16.msra.mxu0 0
    %888 = vmatprep.subr.bf16.mxu0 0
    %889 = vmatpush1.bf16.msra.mxu0 0
    %890 = vmatprep.subr.bf16.mxu0 0
    %891 = vmatpush1.bf16.msra.mxu0 %v33
    %892 = vmatprep.subr.bf16.mxu0 0
    %893 = vmatpush1.bf16.msra.mxu0 %v32
    %894 = vmatprep.subr.bf16.mxu0 0
    %895 = vmatpush2.bf16.msra.mxu0 0
    %896 = vmatprep.subr.bf16.mxu0 0
    %897 = vmatpush2.bf16.msra.mxu0 0
    %898 = vmatprep.subr.bf16.mxu0 0
    %899 = vmatpush2.bf16.msra.mxu0 0
    %900 = vmatprep.subr.bf16.mxu0 0
    %901 = vmatpush2.bf16.msra.mxu0 0
    %902 = vmatprep.subr.bf16.mxu0 0
    %903 = vmatpush2.bf16.msra.mxu0 0
    %904 = vmatprep.subr.bf16.mxu0 0
    %905 = vmatpush2.bf16.msra.mxu0 0
    %906 = vmatprep.subr.bf16.mxu0 0
    %907 = vmatpush2.bf16.msra.mxu0 0
    %908 = vmatprep.subr.bf16.mxu0 0
    %909 = vmatpush2.bf16.msra.mxu0 0
    %910 = vmatprep.mubr.bf16.mxu0 0
    %911 = vmatmul.mubr.bf16.gmra.mxu0 %v876
    %v912 = vpop.f32.mrf.mxu0
    %v913 = vadd.f32 0.0, %v912
    %v914 = vpop.f32.mrf.mxu0
    %v915 = vpop.f32.mrf.mxu0
    %v916 = vpop.f32.mrf.mxu0
    %917 = vdwg.mxu0
    %v918 = vadd.f32 %v235, %v913
    %v919 = vxor.u32 %v918, 2147483648
    %v920 = vmul.f32 %v919, 1.442695
    %v921 = vpow.pop %v920
    %v922 = vadd.f32 %v921, 1.0
    %v923 = vrcp.pop %v922
    %v924 = vmul.f32 1.0, %v923
    %v925 = vmul.f32 %v924, 2.0
    %v926 = vsub.f32 %v925, 1.0
    %v927 = vmul.f32 %v924, %v786
    %929 = vrot.lane.b32.xlu0 %v926, 64
    %v930 = vpop.permute.xlu0 %929
    %v932 = vmul.f32 %v924, %v930
    %934 = vrot.lane.b32.xlu0 %v932, 32
    %v935 = vpop.permute.xlu0 %934
    %v937 = vadd.f32 %v927, %v935
    %v938 = vtanh.pop %v937
    %940 = vrot.lane.b32.xlu0 %v938, 64
    %v941 = vpop.permute.xlu0 %940
    %v943 = vmul.f32 %v924, %v941
    %945 = vrot.lane.b32.xlu0 %v943, 32
    %v946 = vpop.permute.xlu0 %945
    %949 = vrot.lane.b32.xlu0 %v870, 64
    %v950 = vpop.permute.xlu0 %949
    %v952 = vsel %vm420, %v946, %v950
    %v953 = vpack.c.bf16 %v952, %v952
    %v955 = vsel %vm500, %v953, 0
    %957 = vmatprep.subr.bf16.mxu0 0
    %958 = vmatpush1.bf16.msra.mxu0 0
    %959 = vmatprep.subr.bf16.mxu0 0
    %960 = vmatpush1.bf16.msra.mxu0 0
    %961 = vmatprep.subr.bf16.mxu0 0
    %962 = vmatpush1.bf16.msra.mxu0 0
    %963 = vmatprep.subr.bf16.mxu0 0
    %964 = vmatpush1.bf16.msra.mxu0 0
    %965 = vmatprep.subr.bf16.mxu0 0
    %966 = vmatpush1.bf16.msra.mxu0 %v45
    %967 = vmatprep.subr.bf16.mxu0 0
    %968 = vmatpush1.bf16.msra.mxu0 %v44
    %969 = vmatprep.subr.bf16.mxu0 0
    %970 = vmatpush1.bf16.msra.mxu0 %v43
    %971 = vmatprep.subr.bf16.mxu0 0
    %972 = vmatpush1.bf16.msra.mxu0 %v42
    %973 = vmatprep.subr.bf16.mxu0 0
    %974 = vmatpush2.bf16.msra.mxu0 0
    %975 = vmatprep.subr.bf16.mxu0 0
    %976 = vmatpush2.bf16.msra.mxu0 0
    %977 = vmatprep.subr.bf16.mxu0 0
    %978 = vmatpush2.bf16.msra.mxu0 0
    %979 = vmatprep.subr.bf16.mxu0 0
    %980 = vmatpush2.bf16.msra.mxu0 0
    %981 = vmatprep.subr.bf16.mxu0 0
    %982 = vmatpush2.bf16.msra.mxu0 0
    %983 = vmatprep.subr.bf16.mxu0 0
    %984 = vmatpush2.bf16.msra.mxu0 0
    %985 = vmatprep.subr.bf16.mxu0 0
    %986 = vmatpush2.bf16.msra.mxu0 0
    %987 = vmatprep.subr.bf16.mxu0 0
    %988 = vmatpush2.bf16.msra.mxu0 0
    %989 = vmatprep.mubr.bf16.mxu0 0
    %990 = vmatmul.mubr.bf16.gmra.mxu0 %v955
    %v991 = vpop.f32.mrf.mxu0
    %v992 = vadd.f32 %v499, %v991
    %v993 = vpop.f32.mrf.mxu0
    %v994 = vpop.f32.mrf.mxu0
    %v995 = vpop.f32.mrf.mxu0
    %996 = vdwg.mxu0
    %v997 = vxor.u32 %v992, 2147483648
    %v998 = vmul.f32 %v997, 1.442695
    %v999 = vpow.pop %v998
    %v1000 = vadd.f32 %v999, 1.0
    %v1001 = vrcp.pop %v1000
    %v1002 = vmul.f32 1.0, %v1001
    %v1003 = vmul.f32 %v1002, 2.0
    %v1004 = vsub.f32 %v1003, 1.0
    %v1005 = vmul.f32 %v1002, %v864
    %1007 = vrot.lane.b32.xlu0 %v1004, 64
    %v1008 = vpop.permute.xlu0 %1007
    %v1010 = vmul.f32 %v1002, %v1008
    %1012 = vrot.lane.b32.xlu0 %v1010, 32
    %v1013 = vpop.permute.xlu0 %1012
    %v1015 = vadd.f32 %v1005, %v1013
    %v1016 = vtanh.pop %v1015
    %1018 = vrot.lane.b32.xlu0 %v1016, 64
    %v1019 = vpop.permute.xlu0 %1018
    %v1021 = vmul.f32 %v1002, %v1019
    %v1022 = vpack.c.bf16 %v943, %v943
    %1024 = vrot.lane.b32.xlu0 %v1022, 32
    %v1025 = vpop.permute.xlu0 %1024
    %v1027 = vsel %vm420, %v1025, 0
    %1029 = vmatprep.subr.bf16.mxu0 0
    %1030 = vmatpush1.bf16.msra.mxu0 0
    %1031 = vmatprep.subr.bf16.mxu0 0
    %1032 = vmatpush1.bf16.msra.mxu0 0
    %1033 = vmatprep.subr.bf16.mxu0 0
    %1034 = vmatpush1.bf16.msra.mxu0 0
    %1035 = vmatprep.subr.bf16.mxu0 0
    %1036 = vmatpush1.bf16.msra.mxu0 0
    %1037 = vmatprep.subr.bf16.mxu0 0
    %1038 = vmatpush1.bf16.msra.mxu0 0
    %1039 = vmatprep.subr.bf16.mxu0 0
    %1040 = vmatpush1.bf16.msra.mxu0 0
    %1041 = vmatprep.subr.bf16.mxu0 0
    %1042 = vmatpush1.bf16.msra.mxu0 %v33
    %1043 = vmatprep.subr.bf16.mxu0 0
    %1044 = vmatpush1.bf16.msra.mxu0 %v32
    %1045 = vmatprep.subr.bf16.mxu0 0
    %1046 = vmatpush2.bf16.msra.mxu0 0
    %1047 = vmatprep.subr.bf16.mxu0 0
    %1048 = vmatpush2.bf16.msra.mxu0 0
    %1049 = vmatprep.subr.bf16.mxu0 0
    %1050 = vmatpush2.bf16.msra.mxu0 0
    %1051 = vmatprep.subr.bf16.mxu0 0
    %1052 = vmatpush2.bf16.msra.mxu0 0
    %1053 = vmatprep.subr.bf16.mxu0 0
    %1054 = vmatpush2.bf16.msra.mxu0 0
    %1055 = vmatprep.subr.bf16.mxu0 0
    %1056 = vmatpush2.bf16.msra.mxu0 0
    %1057 = vmatprep.subr.bf16.mxu0 0
    %1058 = vmatpush2.bf16.msra.mxu0 0
    %1059 = vmatprep.subr.bf16.mxu0 0
    %1060 = vmatpush2.bf16.msra.mxu0 0
    %1061 = vmatprep.mubr.bf16.mxu0 0
    %1062 = vmatmul.mubr.bf16.gmra.mxu0 %v1027
    %v1063 = vpop.f32.mrf.mxu0
    %v1064 = vadd.f32 0.0, %v1063
    %v1065 = vpop.f32.mrf.mxu0
    %v1066 = vpop.f32.mrf.mxu0
    %v1067 = vpop.f32.mrf.mxu0
    %1068 = vdwg.mxu0
    %v1069 = vadd.f32 %v280, %v1064
    %v1070 = vxor.u32 %v1069, 2147483648
    %v1071 = vmul.f32 %v1070, 1.442695
    %v1072 = vpow.pop %v1071
    %v1073 = vadd.f32 %v1072, 1.0
    %v1074 = vrcp.pop %v1073
    %v1075 = vmul.f32 1.0, %v1074
    %v1076 = vmul.f32 %v1075, 2.0
    %v1077 = vsub.f32 %v1076, 1.0
    %v1078 = vmul.f32 %v1075, %v937
    %1080 = vrot.lane.b32.xlu0 %v1077, 64
    %v1081 = vpop.permute.xlu0 %1080
    %v1083 = vmul.f32 %v1075, %v1081
    %1085 = vrot.lane.b32.xlu0 %v1083, 32
    %v1086 = vpop.permute.xlu0 %1085
    %v1088 = vadd.f32 %v1078, %v1086
    %v1089 = vtanh.pop %v1088
    %1091 = vrot.lane.b32.xlu0 %v1089, 64
    %v1092 = vpop.permute.xlu0 %1091
    %v1094 = vmul.f32 %v1075, %v1092
    %1096 = vrot.lane.b32.xlu0 %v1094, 32
    %v1097 = vpop.permute.xlu0 %1096
    %1100 = vrot.lane.b32.xlu0 %v1021, 64
    %v1101 = vpop.permute.xlu0 %1100
    %v1103 = vsel %vm420, %v1097, %v1101
    %v1104 = vpack.c.bf16 %v1103, %v1103
    %v1106 = vsel %vm500, %v1104, 0
    %1108 = vmatprep.subr.bf16.mxu0 0
    %1109 = vmatpush1.bf16.msra.mxu0 0
    %1110 = vmatprep.subr.bf16.mxu0 0
    %1111 = vmatpush1.bf16.msra.mxu0 0
    %1112 = vmatprep.subr.bf16.mxu0 0
    %1113 = vmatpush1.bf16.msra.mxu0 0
    %1114 = vmatprep.subr.bf16.mxu0 0
    %1115 = vmatpush1.bf16.msra.mxu0 0
    %1116 = vmatprep.subr.bf16.mxu0 0
    %1117 = vmatpush1.bf16.msra.mxu0 %v45
    %1118 = vmatprep.subr.bf16.mxu0 0
    %1119 = vmatpush1.bf16.msra.mxu0 %v44
    %1120 = vmatprep.subr.bf16.mxu0 0
    %1121 = vmatpush1.bf16.msra.mxu0 %v43
    %1122 = vmatprep.subr.bf16.mxu0 0
    %1123 = vmatpush1.bf16.msra.mxu0 %v42
    %1124 = vmatprep.subr.bf16.mxu0 0
    %1125 = vmatpush2.bf16.msra.mxu0 0
    %1126 = vmatprep.subr.bf16.mxu0 0
    %1127 = vmatpush2.bf16.msra.mxu0 0
    %1128 = vmatprep.subr.bf16.mxu0 0
    %1129 = vmatpush2.bf16.msra.mxu0 0
    %1130 = vmatprep.subr.bf16.mxu0 0
    %1131 = vmatpush2.bf16.msra.mxu0 0
    %1132 = vmatprep.subr.bf16.mxu0 0
    %1133 = vmatpush2.bf16.msra.mxu0 0
    %1134 = vmatprep.subr.bf16.mxu0 0
    %1135 = vmatpush2.bf16.msra.mxu0 0
    %1136 = vmatprep.subr.bf16.mxu0 0
    %1137 = vmatpush2.bf16.msra.mxu0 0
    %1138 = vmatprep.subr.bf16.mxu0 0
    %1139 = vmatpush2.bf16.msra.mxu0 0
    %1140 = vmatprep.mubr.bf16.mxu0 0
    %1141 = vmatmul.mubr.bf16.gmra.mxu0 %v1106
    %v1142 = vpop.f32.mrf.mxu0
    %v1143 = vadd.f32 %v499, %v1142
    %v1144 = vpop.f32.mrf.mxu0
    %v1145 = vpop.f32.mrf.mxu0
    %v1146 = vpop.f32.mrf.mxu0
    %1147 = vdwg.mxu0
    %v1148 = vxor.u32 %v1143, 2147483648
    %v1149 = vmul.f32 %v1148, 1.442695
    %v1150 = vpow.pop %v1149
    %v1151 = vadd.f32 %v1150, 1.0
    %v1152 = vrcp.pop %v1151
    %v1153 = vmul.f32 1.0, %v1152
    %v1154 = vmul.f32 %v1153, 2.0
    %v1155 = vsub.f32 %v1154, 1.0
    %v1156 = vmul.f32 %v1153, %v1015
    %1158 = vrot.lane.b32.xlu0 %v1155, 64
    %v1159 = vpop.permute.xlu0 %1158
    %v1161 = vmul.f32 %v1153, %v1159
    %1163 = vrot.lane.b32.xlu0 %v1161, 32
    %v1164 = vpop.permute.xlu0 %1163
    %v1166 = vadd.f32 %v1156, %v1164
    %v1167 = vtanh.pop %v1166
    %1169 = vrot.lane.b32.xlu0 %v1167, 64
    %v1170 = vpop.permute.xlu0 %1169
    %v1172 = vmul.f32 %v1153, %v1170
    %v1173 = vpack.c.bf16 %v1094, %v1094
    %1175 = vrot.lane.b32.xlu0 %v1173, 32
    %v1176 = vpop.permute.xlu0 %1175
    %v1178 = vsel %vm420, %v1176, 0
    %1180 = vmatprep.subr.bf16.mxu0 0
    %1181 = vmatpush1.bf16.msra.mxu0 0
    %1182 = vmatprep.subr.bf16.mxu0 0
    %1183 = vmatpush1.bf16.msra.mxu0 0
    %1184 = vmatprep.subr.bf16.mxu0 0
    %1185 = vmatpush1.bf16.msra.mxu0 0
    %1186 = vmatprep.subr.bf16.mxu0 0
    %1187 = vmatpush1.bf16.msra.mxu0 0
    %1188 = vmatprep.subr.bf16.mxu0 0
    %1189 = vmatpush1.bf16.msra.mxu0 0
    %1190 = vmatprep.subr.bf16.mxu0 0
    %1191 = vmatpush1.bf16.msra.mxu0 0
    %1192 = vmatprep.subr.bf16.mxu0 0
    %1193 = vmatpush1.bf16.msra.mxu0 %v33
    %1194 = vmatprep.subr.bf16.mxu0 0
    %1195 = vmatpush1.bf16.msra.mxu0 %v32
    %1196 = vmatprep.subr.bf16.mxu0 0
    %1197 = vmatpush2.bf16.msra.mxu0 0
    %1198 = vmatprep.subr.bf16.mxu0 0
    %1199 = vmatpush2.bf16.msra.mxu0 0
    %1200 = vmatprep.subr.bf16.mxu0 0
    %1201 = vmatpush2.bf16.msra.mxu0 0
    %1202 = vmatprep.subr.bf16.mxu0 0
    %1203 = vmatpush2.bf16.msra.mxu0 0
    %1204 = vmatprep.subr.bf16.mxu0 0
    %1205 = vmatpush2.bf16.msra.mxu0 0
    %1206 = vmatprep.subr.bf16.mxu0 0
    %1207 = vmatpush2.bf16.msra.mxu0 0
    %1208 = vmatprep.subr.bf16.mxu0 0
    %1209 = vmatpush2.bf16.msra.mxu0 0
    %1210 = vmatprep.subr.bf16.mxu0 0
    %1211 = vmatpush2.bf16.msra.mxu0 0
    %1212 = vmatprep.mubr.bf16.mxu0 0
    %1213 = vmatmul.mubr.bf16.gmra.mxu0 %v1178
    %v1214 = vpop.f32.mrf.mxu0
    %v1215 = vadd.f32 0.0, %v1214
    %v1216 = vpop.f32.mrf.mxu0
    %v1217 = vpop.f32.mrf.mxu0
    %v1218 = vpop.f32.mrf.mxu0
    %1219 = vdwg.mxu0
    %v1220 = vadd.f32 %v325, %v1215
    %v1221 = vxor.u32 %v1220, 2147483648
    %v1222 = vmul.f32 %v1221, 1.442695
    %v1223 = vpow.pop %v1222
    %v1224 = vadd.f32 %v1223, 1.0
    %v1225 = vrcp.pop %v1224
    %v1226 = vmul.f32 1.0, %v1225
    %v1227 = vmul.f32 %v1226, 2.0
    %v1228 = vsub.f32 %v1227, 1.0
    %v1229 = vmul.f32 %v1226, %v1088
    %1231 = vrot.lane.b32.xlu0 %v1228, 64
    %v1232 = vpop.permute.xlu0 %1231
    %v1234 = vmul.f32 %v1226, %v1232
    %1236 = vrot.lane.b32.xlu0 %v1234, 32
    %v1237 = vpop.permute.xlu0 %1236
    %v1239 = vadd.f32 %v1229, %v1237
    %v1240 = vtanh.pop %v1239
    %1242 = vrot.lane.b32.xlu0 %v1240, 64
    %v1243 = vpop.permute.xlu0 %1242
    %v1245 = vmul.f32 %v1226, %v1243
    %1247 = vrot.lane.b32.xlu0 %v1245, 32
    %v1248 = vpop.permute.xlu0 %1247
    %1251 = vrot.lane.b32.xlu0 %v1172, 64
    %v1252 = vpop.permute.xlu0 %1251
    %v1254 = vsel %vm420, %v1248, %v1252
    %v1255 = vpack.c.bf16 %v1254, %v1254
    %v1257 = vsel %vm500, %v1255, 0
    %1259 = vmatprep.subr.bf16.mxu0 0
    %1260 = vmatpush1.bf16.msra.mxu0 0
    %1261 = vmatprep.subr.bf16.mxu0 0
    %1262 = vmatpush1.bf16.msra.mxu0 0
    %1263 = vmatprep.subr.bf16.mxu0 0
    %1264 = vmatpush1.bf16.msra.mxu0 0
    %1265 = vmatprep.subr.bf16.mxu0 0
    %1266 = vmatpush1.bf16.msra.mxu0 0
    %1267 = vmatprep.subr.bf16.mxu0 0
    %1268 = vmatpush1.bf16.msra.mxu0 %v45
    %1269 = vmatprep.subr.bf16.mxu0 0
    %1270 = vmatpush1.bf16.msra.mxu0 %v44
    %1271 = vmatprep.subr.bf16.mxu0 0
    %1272 = vmatpush1.bf16.msra.mxu0 %v43
    %1273 = vmatprep.subr.bf16.mxu0 0
    %1274 = vmatpush1.bf16.msra.mxu0 %v42
    %1275 = vmatprep.subr.bf16.mxu0 0
    %1276 = vmatpush2.bf16.msra.mxu0 0
    %1277 = vmatprep.subr.bf16.mxu0 0
    %1278 = vmatpush2.bf16.msra.mxu0 0
    %1279 = vmatprep.subr.bf16.mxu0 0
    %1280 = vmatpush2.bf16.msra.mxu0 0
    %1281 = vmatprep.subr.bf16.mxu0 0
    %1282 = vmatpush2.bf16.msra.mxu0 0
    %1283 = vmatprep.subr.bf16.mxu0 0
    %1284 = vmatpush2.bf16.msra.mxu0 0
    %1285 = vmatprep.subr.bf16.mxu0 0
    %1286 = vmatpush2.bf16.msra.mxu0 0
    %1287 = vmatprep.subr.bf16.mxu0 0
    %1288 = vmatpush2.bf16.msra.mxu0 0
    %1289 = vmatprep.subr.bf16.mxu0 0
    %1290 = vmatpush2.bf16.msra.mxu0 0
    %1291 = vmatprep.mubr.bf16.mxu0 0
    %1292 = vmatmul.mubr.bf16.gmra.mxu0 %v1257
    %v1293 = vpop.f32.mrf.mxu0
    %v1294 = vadd.f32 %v499, %v1293
    %v1295 = vpop.f32.mrf.mxu0
    %v1296 = vpop.f32.mrf.mxu0
    %v1297 = vpop.f32.mrf.mxu0
    %1298 = vdwg.mxu0
    %v1299 = vxor.u32 %v1294, 2147483648
    %v1300 = vmul.f32 %v1299, 1.442695
    %v1301 = vpow.pop %v1300
    %v1302 = vadd.f32 %v1301, 1.0
    %v1303 = vrcp.pop %v1302
    %v1304 = vmul.f32 1.0, %v1303
    %v1305 = vmul.f32 %v1304, 2.0
    %v1306 = vsub.f32 %v1305, 1.0
    %v1307 = vmul.f32 %v1304, %v1166
    %1309 = vrot.lane.b32.xlu0 %v1306, 64
    %v1310 = vpop.permute.xlu0 %1309
    %v1312 = vmul.f32 %v1304, %v1310
    %1314 = vrot.lane.b32.xlu0 %v1312, 32
    %v1315 = vpop.permute.xlu0 %1314
    %v1317 = vadd.f32 %v1307, %v1315
    %v1318 = vtanh.pop %v1317
    %1320 = vrot.lane.b32.xlu0 %v1318, 64
    %v1321 = vpop.permute.xlu0 %1320
    %v1323 = vmul.f32 %v1304, %v1321
    %v1324 = vpack.c.bf16 %v1245, %v1245
    %1326 = vrot.lane.b32.xlu0 %v1324, 32
    %v1327 = vpop.permute.xlu0 %1326
    %v1329 = vsel %vm420, %v1327, 0
    %1331 = vmatprep.subr.bf16.mxu0 0
    %1332 = vmatpush1.bf16.msra.mxu0 0
    %1333 = vmatprep.subr.bf16.mxu0 0
    %1334 = vmatpush1.bf16.msra.mxu0 0
    %1335 = vmatprep.subr.bf16.mxu0 0
    %1336 = vmatpush1.bf16.msra.mxu0 0
    %1337 = vmatprep.subr.bf16.mxu0 0
    %1338 = vmatpush1.bf16.msra.mxu0 0
    %1339 = vmatprep.subr.bf16.mxu0 0
    %1340 = vmatpush1.bf16.msra.mxu0 0
    %1341 = vmatprep.subr.bf16.mxu0 0
    %1342 = vmatpush1.bf16.msra.mxu0 0
    %1343 = vmatprep.subr.bf16.mxu0 0
    %1344 = vmatpush1.bf16.msra.mxu0 %v33
    %1345 = vmatprep.subr.bf16.mxu0 0
    %1346 = vmatpush1.bf16.msra.mxu0 %v32
    %1347 = vmatprep.subr.bf16.mxu0 0
    %1348 = vmatpush2.bf16.msra.mxu0 0
    %1349 = vmatprep.subr.bf16.mxu0 0
    %1350 = vmatpush2.bf16.msra.mxu0 0
    %1351 = vmatprep.subr.bf16.mxu0 0
    %1352 = vmatpush2.bf16.msra.mxu0 0
    %1353 = vmatprep.subr.bf16.mxu0 0
    %1354 = vmatpush2.bf16.msra.mxu0 0
    %1355 = vmatprep.subr.bf16.mxu0 0
    %1356 = vmatpush2.bf16.msra.mxu0 0
    %1357 = vmatprep.subr.bf16.mxu0 0
    %1358 = vmatpush2.bf16.msra.mxu0 0
    %1359 = vmatprep.subr.bf16.mxu0 0
    %1360 = vmatpush2.bf16.msra.mxu0 0
    %1361 = vmatprep.subr.bf16.mxu0 0
    %1362 = vmatpush2.bf16.msra.mxu0 0
    %1363 = vmatprep.mubr.bf16.mxu0 0
    %1364 = vmatmul.mubr.bf16.gmra.mxu0 %v1329
    %v1365 = vpop.f32.mrf.mxu0
    %v1366 = vadd.f32 0.0, %v1365
    %v1367 = vpop.f32.mrf.mxu0
    %v1368 = vpop.f32.mrf.mxu0
    %v1369 = vpop.f32.mrf.mxu0
    %1370 = vdwg.mxu0
    %v1371 = vadd.f32 %v370, %v1366
    %v1372 = vxor.u32 %v1371, 2147483648
    %v1373 = vmul.f32 %v1372, 1.442695
    %v1374 = vpow.pop %v1373
    %v1375 = vadd.f32 %v1374, 1.0
    %v1376 = vrcp.pop %v1375
    %v1377 = vmul.f32 1.0, %v1376
    %v1378 = vmul.f32 %v1377, 2.0
    %v1379 = vsub.f32 %v1378, 1.0
    %v1380 = vmul.f32 %v1377, %v1239
    %1382 = vrot.lane.b32.xlu0 %v1379, 64
    %v1383 = vpop.permute.xlu0 %1382
    %v1385 = vmul.f32 %v1377, %v1383
    %1387 = vrot.lane.b32.xlu0 %v1385, 32
    %v1388 = vpop.permute.xlu0 %1387
    %v1390 = vadd.f32 %v1380, %v1388
    %v1391 = vtanh.pop %v1390
    %1393 = vrot.lane.b32.xlu0 %v1391, 64
    %v1394 = vpop.permute.xlu0 %1393
    %v1396 = vmul.f32 %v1377, %v1394
    %1398 = vrot.lane.b32.xlu0 %v1396, 32
    %v1399 = vpop.permute.xlu0 %1398
    %1402 = vrot.lane.b32.xlu0 %v1323, 64
    %v1403 = vpop.permute.xlu0 %1402
    %v1405 = vsel %vm420, %v1399, %v1403
    %v1406 = vpack.c.bf16 %v1405, %v1405
    %v1408 = vsel %vm500, %v1406, 0
    %1410 = vmatprep.subr.bf16.mxu0 0
    %1411 = vmatpush1.bf16.msra.mxu0 0
    %1412 = vmatprep.subr.bf16.mxu0 0
    %1413 = vmatpush1.bf16.msra.mxu0 0
    %1414 = vmatprep.subr.bf16.mxu0 0
    %1415 = vmatpush1.bf16.msra.mxu0 0
    %1416 = vmatprep.subr.bf16.mxu0 0
    %1417 = vmatpush1.bf16.msra.mxu0 0
    %1418 = vmatprep.subr.bf16.mxu0 0
    %1419 = vmatpush1.bf16.msra.mxu0 %v45
    %1420 = vmatprep.subr.bf16.mxu0 0
    %1421 = vmatpush1.bf16.msra.mxu0 %v44
    %1422 = vmatprep.subr.bf16.mxu0 0
    %1423 = vmatpush1.bf16.msra.mxu0 %v43
    %1424 = vmatprep.subr.bf16.mxu0 0
    %1425 = vmatpush1.bf16.msra.mxu0 %v42
    %1426 = vmatprep.subr.bf16.mxu0 0
    %1427 = vmatpush2.bf16.msra.mxu0 0
    %1428 = vmatprep.subr.bf16.mxu0 0
    %1429 = vmatpush2.bf16.msra.mxu0 0
    %1430 = vmatprep.subr.bf16.mxu0 0
    %1431 = vmatpush2.bf16.msra.mxu0 0
    %1432 = vmatprep.subr.bf16.mxu0 0
    %1433 = vmatpush2.bf16.msra.mxu0 0
    %1434 = vmatprep.subr.bf16.mxu0 0
    %1435 = vmatpush2.bf16.msra.mxu0 0
    %1436 = vmatprep.subr.bf16.mxu0 0
    %1437 = vmatpush2.bf16.msra.mxu0 0
    %1438 = vmatprep.subr.bf16.mxu0 0
    %1439 = vmatpush2.bf16.msra.mxu0 0
    %1440 = vmatprep.subr.bf16.mxu0 0
    %1441 = vmatpush2.bf16.msra.mxu0 0
    %1442 = vmatprep.mubr.bf16.mxu0 0
    %1443 = vmatmul.mubr.bf16.gmra.mxu0 %v1408
    %v1444 = vpop.f32.mrf.mxu0
    %v1445 = vadd.f32 %v499, %v1444
    %v1446 = vpop.f32.mrf.mxu0
    %v1447 = vpop.f32.mrf.mxu0
    %v1448 = vpop.f32.mrf.mxu0
    %1449 = vdwg.mxu0
    %v1450 = vxor.u32 %v1445, 2147483648
    %v1451 = vmul.f32 %v1450, 1.442695
    %v1452 = vpow.pop %v1451
    %v1453 = vadd.f32 %v1452, 1.0
    %v1454 = vrcp.pop %v1453
    %v1455 = vmul.f32 1.0, %v1454
    %v1456 = vmul.f32 %v1455, 2.0
    %v1457 = vsub.f32 %v1456, 1.0
    %v1458 = vmul.f32 %v1455, %v1317
    %1460 = vrot.lane.b32.xlu0 %v1457, 64
    %v1461 = vpop.permute.xlu0 %1460
    %v1463 = vmul.f32 %v1455, %v1461
    %1465 = vrot.lane.b32.xlu0 %v1463, 32
    %v1466 = vpop.permute.xlu0 %1465
    %v1468 = vadd.f32 %v1458, %v1466
    %v1469 = vtanh.pop %v1468
    %1471 = vrot.lane.b32.xlu0 %v1469, 64
    %v1472 = vpop.permute.xlu0 %1471
    %v1474 = vmul.f32 %v1455, %v1472
    %v1475 = vpack.c.bf16 %v1396, %v1396
    %1477 = vrot.lane.b32.xlu0 %v1475, 32
    %v1478 = vpop.permute.xlu0 %1477
    %v1480 = vsel %vm420, %v1478, 0
    %1482 = vmatprep.subr.bf16.mxu0 0
    %1483 = vmatpush1.bf16.msra.mxu0 0
    %1484 = vmatprep.subr.bf16.mxu0 0
    %1485 = vmatpush1.bf16.msra.mxu0 0
    %1486 = vmatprep.subr.bf16.mxu0 0
    %1487 = vmatpush1.bf16.msra.mxu0 0
    %1488 = vmatprep.subr.bf16.mxu0 0
    %1489 = vmatpush1.bf16.msra.mxu0 0
    %1490 = vmatprep.subr.bf16.mxu0 0
    %1491 = vmatpush1.bf16.msra.mxu0 0
    %1492 = vmatprep.subr.bf16.mxu0 0
    %1493 = vmatpush1.bf16.msra.mxu0 0
    %1494 = vmatprep.subr.bf16.mxu0 0
    %1495 = vmatpush1.bf16.msra.mxu0 %v33
    %1496 = vmatprep.subr.bf16.mxu0 0
    %1497 = vmatpush1.bf16.msra.mxu0 %v32
    %1498 = vmatprep.subr.bf16.mxu0 0
    %1499 = vmatpush2.bf16.msra.mxu0 0
    %1500 = vmatprep.subr.bf16.mxu0 0
    %1501 = vmatpush2.bf16.msra.mxu0 0
    %1502 = vmatprep.subr.bf16.mxu0 0
    %1503 = vmatpush2.bf16.msra.mxu0 0
    %1504 = vmatprep.subr.bf16.mxu0 0
    %1505 = vmatpush2.bf16.msra.mxu0 0
    %1506 = vmatprep.subr.bf16.mxu0 0
    %1507 = vmatpush2.bf16.msra.mxu0 0
    %1508 = vmatprep.subr.bf16.mxu0 0
    %1509 = vmatpush2.bf16.msra.mxu0 0
    %1510 = vmatprep.subr.bf16.mxu0 0
    %1511 = vmatpush2.bf16.msra.mxu0 0
    %1512 = vmatprep.subr.bf16.mxu0 0
    %1513 = vmatpush2.bf16.msra.mxu0 0
    %1514 = vmatprep.mubr.bf16.mxu0 0
    %1515 = vmatmul.mubr.bf16.gmra.mxu0 %v1480
    %v1516 = vpop.f32.mrf.mxu0
    %v1517 = vadd.f32 0.0, %v1516
    %v1518 = vpop.f32.mrf.mxu0
    %v1519 = vpop.f32.mrf.mxu0
    %v1520 = vpop.f32.mrf.mxu0
    %1521 = vdwg.mxu0
    %v1522 = vadd.f32 %v415, %v1517
    %v1523 = vxor.u32 %v1522, 2147483648
    %v1524 = vmul.f32 %v1523, 1.442695
    %v1525 = vpow.pop %v1524
    %v1526 = vadd.f32 %v1525, 1.0
    %v1527 = vrcp.pop %v1526
    %v1528 = vmul.f32 1.0, %v1527
    %v1529 = vmul.f32 %v1528, 2.0
    %v1530 = vsub.f32 %v1529, 1.0
    %v1531 = vmul.f32 %v1528, %v1390
    %1533 = vrot.lane.b32.xlu0 %v1530, 64
    %v1534 = vpop.permute.xlu0 %1533
    %v1536 = vmul.f32 %v1528, %v1534
    %1538 = vrot.lane.b32.xlu0 %v1536, 32
    %v1539 = vpop.permute.xlu0 %1538
    %v1541 = vadd.f32 %v1531, %v1539
    %v1542 = vtanh.pop %v1541
    %1544 = vrot.lane.b32.xlu0 %v1542, 64
    %v1545 = vpop.permute.xlu0 %1544
    %v1547 = vmul.f32 %v1528, %v1545
    %1549 = vrot.lane.b32.xlu0 %v1547, 32
    %v1550 = vpop.permute.xlu0 %1549
    %1553 = vrot.lane.b32.xlu0 %v1474, 64
    %v1554 = vpop.permute.xlu0 %1553
    %v1556 = vsel %vm420, %v1550, %v1554
    %v1557 = vpack.c.bf16 %v1556, %v1556
    %v1559 = vsel %vm500, %v1557, 0
    %1561 = vmatprep.subr.bf16.mxu0 0
    %1562 = vmatpush1.bf16.msra.mxu0 0
    %1563 = vmatprep.subr.bf16.mxu0 0
    %1564 = vmatpush1.bf16.msra.mxu0 0
    %1565 = vmatprep.subr.bf16.mxu0 0
    %1566 = vmatpush1.bf16.msra.mxu0 0
    %1567 = vmatprep.subr.bf16.mxu0 0
    %1568 = vmatpush1.bf16.msra.mxu0 0
    %1569 = vmatprep.subr.bf16.mxu0 0
    %1570 = vmatpush1.bf16.msra.mxu0 %v45
    %1571 = vmatprep.subr.bf16.mxu0 0
    %1572 = vmatpush1.bf16.msra.mxu0 %v44
    %1573 = vmatprep.subr.bf16.mxu0 0
    %1574 = vmatpush1.bf16.msra.mxu0 %v43
    %1575 = vmatprep.subr.bf16.mxu0 0
    %1576 = vmatpush1.bf16.msra.mxu0 %v42
    %1577 = vmatprep.subr.bf16.mxu0 0
    %1578 = vmatpush2.bf16.msra.mxu0 0
    %1579 = vmatprep.subr.bf16.mxu0 0
    %1580 = vmatpush2.bf16.msra.mxu0 0
    %1581 = vmatprep.subr.bf16.mxu0 0
    %1582 = vmatpush2.bf16.msra.mxu0 0
    %1583 = vmatprep.subr.bf16.mxu0 0
    %1584 = vmatpush2.bf16.msra.mxu0 0
    %1585 = vmatprep.subr.bf16.mxu0 0
    %1586 = vmatpush2.bf16.msra.mxu0 0
    %1587 = vmatprep.subr.bf16.mxu0 0
    %1588 = vmatpush2.bf16.msra.mxu0 0
    %1589 = vmatprep.subr.bf16.mxu0 0
    %1590 = vmatpush2.bf16.msra.mxu0 0
    %1591 = vmatprep.subr.bf16.mxu0 0
    %1592 = vmatpush2.bf16.msra.mxu0 0
    %1593 = vmatprep.mubr.bf16.mxu0 0
    %1594 = vmatmul.mubr.bf16.gmra.mxu0 %v1559
    %v1595 = vpop.f32.mrf.mxu0
    %v1596 = vadd.f32 %v499, %v1595
    %v1597 = vpop.f32.mrf.mxu0
    %v1598 = vpop.f32.mrf.mxu0
    %v1599 = vpop.f32.mrf.mxu0
    %1600 = vdwg.mxu0
    %v1601 = vxor.u32 %v1596, 2147483648
    %v1602 = vmul.f32 %v1601, 1.442695
    %v1603 = vpow.pop %v1602
    %v1604 = vadd.f32 %v1603, 1.0
    %v1605 = vrcp.pop %v1604
    %v1606 = vmul.f32 1.0, %v1605
    %v1607 = vmul.f32 %v1606, 2.0
    %v1608 = vsub.f32 %v1607, 1.0
    %v1609 = vmul.f32 %v1606, %v1468
    %1611 = vrot.lane.b32.xlu0 %v1608, 64
    %v1612 = vpop.permute.xlu0 %1611
    %v1614 = vmul.f32 %v1606, %v1612
    %1616 = vrot.lane.b32.xlu0 %v1614, 32
    %v1617 = vpop.permute.xlu0 %1616
    %v1619 = vadd.f32 %v1609, %v1617
    %v1620 = vtanh.pop %v1619
    %1622 = vrot.lane.b32.xlu0 %v1620, 64
    %v1623 = vpop.permute.xlu0 %1622
    %v1625 = vmul.f32 %v1606, %v1623
    %v1626 = vld [vmem:[#allocation2 + $0x70] sm:$0x1]
    %v1627 = vlaneseq
    %v1628 = vshrl.u32 %v1627, 7
    %v1629 = vsub.s32 0, %v1628
    %v1630 = vrot.slane %v1626, %v1629
    %1632 = vrot.lane.b32.xlu0 %v1630, 96
    %v1633 = vpop.permute.xlu0 %1632
    %v1635 = vmul.f32 %v1625, %v1633
    %1637 = vrot.lane.b32.xlu0 %v1635, 32
    %v1638 = vpop.permute.xlu0 %1637
    %v1640 = vsel %vm420, %v1638, 0.0
    %1641 = vadd.xlane.f32.xlu0 %v1640
    %v1642 = vpop.xlane.xlu0 %1641
    %v1643 = vlaneseq
    %v1644 = vshrl.u32 %v1643, 7
    %v1645 = vsub.s32 0, %v1644
    %v1646 = vrot.slane %v48, %v1645
    %v1647 = vadd.f32 %v1642, %v1646
    %vm1648 = vcmask 1024
    %1649 = vst.msk [vmem:[%s2] sm:$0x3] %vm1648, %v1647
    // Predicated region
    $region14: #{stock_lstm_forward.1} parent=1 // pred_check
      _
    $region15: #{stock_lstm_forward.1} parent=1 // pred_check_branch
      %1651 = sbr.rel (0) target = $region17
    $region16: #{stock_lstm_forward.1} parent=1 // pred_region
      _
    $region17: #{stock_lstm_forward.1} parent=1 // pred_fallthru
      _
    // Predicated region
    $region18: #{stock_lstm_forward.1} parent=1 // pred_check
      _
    $region19: #{stock_lstm_forward.1} parent=1 // pred_check_branch
      %1653 = sbr.rel (0) target = $region21
    $region20: #{stock_lstm_forward.1} parent=1 // pred_region
      _
    $region21: #{stock_lstm_forward.1} parent=1 // pred_fallthru
      _
    %1654 = vsyncpa [#allocation3], 1

</llo_original>
